<compile_context>
chip_gen: v6e
topology: v6e:2x2x1
jax: 0.10.0
libtpu: 0.0.40
codegen_flags: <defaults>
</compile_context>

<pallas_src>
import jax
import jax.numpy as jnp
from jax import lax
from jax.experimental import pallas as pl
from jax.experimental.pallas import tpu as pltpu

BN_EPS = 1e-5
CP = 8  # channel padding (f32 sublane granularity); >= real channel count


def encoder_cnn_forward(images, params):
    """images: (B, C, H, W) float32 (NCHW, PyTorch convention)."""
    B, C, H, W = images.shape
    P = H * W
    Cp = params["wc"].shape[0]
    F = params["wc"].shape[1]
    E = params["wl"].shape[1]
    Ep = max(128, ((E + 127) // 128) * 128)  # lane-dense output width

    # NCHW -> (B, Cp, H*W): channels on sublanes, spatial on lanes (no transpose).
    x = images.reshape(B, C, P)
    x = jnp.pad(x, ((0, 0), (0, Cp - C), (0, 0))).astype(jnp.bfloat16)

    # spatial tiling (last dim must be a multiple of 128 or the full extent)
    T_SP = 128 if P % 128 == 0 else P
    n_sp = P // T_SP
    inv_p = 1.0 / P

    # bf16 matmul operands; small bias/BN params stay f32.
    wc = params["wc"].astype(jnp.bfloat16)                       # (Cp, F)
    bc = params["bc"]                                            # (1, F)
    wl = jnp.pad(params["wl"], ((0, 0), (0, Ep - E))).astype(jnp.bfloat16)
    bl = jnp.pad(params["bl"], ((0, 0), (0, Ep - E)))
    gamma = jnp.pad(params["gamma"], ((0, 0), (0, Ep - E)))
    beta = jnp.pad(params["beta"], ((0, 0), (0, Ep - E)))

    def kernel(x_ref, wc_ref, bc_ref, wl_ref, bl_ref, gamma_ref, beta_ref,
               out_ref, acc_ref):
        s = pl.program_id(0)

        @pl.when(s == 0)
        def _():
            acc_ref[...] = jnp.zeros_like(acc_ref)

        # Pool before the conv (exact by linearity): accumulate spatial sums.
        acc_ref[...] += x_ref[...].astype(jnp.float32).sum(axis=-1)

        @pl.when(s == pl.num_programs(0) - 1)
        def _():
            mean_x = acc_ref[...] * inv_p                        # (B, Cp) f32
            # surrogate 1x1 conv + global-average-pool, bias added post-pool
            feat = jnp.dot(mean_x.astype(jnp.bfloat16), wc_ref[...],
                           preferred_element_type=jnp.float32) + bc_ref[...]
            # self.linear
            z = jnp.dot(feat.astype(jnp.bfloat16), wl_ref[...],
                        preferred_element_type=jnp.float32) + bl_ref[...]
            # self.bn (BatchNorm1d, training mode), one-pass batch stats
            mu = jnp.mean(z, axis=0, keepdims=True)
            ex2 = jnp.mean(z * z, axis=0, keepdims=True)
            var = ex2 - mu * mu
            out_ref[...] = ((z - mu) * lax.rsqrt(var + BN_EPS)
                            * gamma_ref[...] + beta_ref[...])

    grid_spec = pltpu.PrefetchScalarGridSpec(
        num_scalar_prefetch=0,
        grid=(n_sp,),
        in_specs=[
            pl.BlockSpec((B, Cp, T_SP), lambda s: (0, 0, s)),    # streamed x
            pl.BlockSpec((Cp, F), lambda s: (0, 0)),             # wc (resident)
            pl.BlockSpec((1, F), lambda s: (0, 0)),              # bc
            pl.BlockSpec((F, Ep), lambda s: (0, 0)),             # wl
            pl.BlockSpec((1, Ep), lambda s: (0, 0)),             # bl
            pl.BlockSpec((1, Ep), lambda s: (0, 0)),             # gamma
            pl.BlockSpec((1, Ep), lambda s: (0, 0)),             # beta
        ],
        out_specs=pl.BlockSpec((B, Ep), lambda s: (0, 0)),
        scratch_shapes=[pltpu.VMEM((B, Cp), jnp.float32)],       # pooled sums
    )

    out = pl.pallas_call(
        kernel,
        out_shape=jax.ShapeDtypeStruct((B, Ep), jnp.float32),
        grid_spec=grid_spec,
        compiler_params=pltpu.CompilerParams(
            dimension_semantics=("arbitrary",),     # reduction axis (carried acc + BN)
            vmem_limit_bytes=16 * 1024 * 1024,      # actual footprint << 16 MiB
        ),
    )(x, wc, bc, wl, bl, gamma, beta)

    return out[:, :E]


def make_params(key, in_channels, feat_dim, embed_size):
    assert in_channels <= CP
    k1, k2, k3 = jax.random.split(key, 3)
    wc = jax.random.normal(k1, (CP, feat_dim), jnp.float32) * 0.05
    bc = jax.random.normal(k2, (1, feat_dim), jnp.float32) * 0.01
    wl = (jax.random.normal(k3, (feat_dim, embed_size), jnp.float32)
          * (1.0 / jnp.sqrt(feat_dim)))
    bl = jnp.zeros((1, embed_size), jnp.float32)
    gamma = jnp.ones((1, embed_size), jnp.float32)   # BatchNorm1d weight init
    beta = jnp.zeros((1, embed_size), jnp.float32)   # BatchNorm1d bias init
    return dict(wc=wc, bc=bc, wl=wl, bl=bl, gamma=gamma, beta=beta)


def reference_forward(images, params):
    """Pure-JAX reference of the same computation (same bf16 operand casts)."""
    B, C, H, W = images.shape
    P = H * W
    Cp = params["wc"].shape[0]
    x = jnp.pad(images.reshape(B, C, P), ((0, 0), (0, Cp - C), (0, 0)))
    x = x.astype(jnp.bfloat16)
    mean_x = x.astype(jnp.float32).mean(axis=-1)                  # (B, Cp)
    feat = jnp.dot(mean_x.astype(jnp.bfloat16),
                   params["wc"].astype(jnp.bfloat16),
                   preferred_element_type=jnp.float32) + params["bc"]
    z = jnp.dot(feat.astype(jnp.bfloat16),
                params["wl"].astype(jnp.bfloat16),
                preferred_element_type=jnp.float32) + params["bl"]
    mu = z.mean(axis=0, keepdims=True)
    var = (z * z).mean(axis=0, keepdims=True) - mu * mu
    return ((z - mu) * lax.rsqrt(var + BN_EPS)
            * params["gamma"] + params["beta"])


if __name__ == "__main__":
    key = jax.random.PRNGKey(0)
    k_img, k_par = jax.random.split(key)

    B, C, H, W = 2, 4, 16, 16          # small NCHW input
    feat_dim = 2048                    # resnet50.fc.in_features
    embed_size = 32

    images = jax.random.normal(k_img, (B, C, H, W), jnp.float32)
    params = make_params(k_par, C, feat_dim, embed_size)

    out = encoder_cnn_forward(images, params)
    out = jax.block_until_ready(out)

    ref = reference_forward(images, params)
    assert out.shape == (B, embed_size)
    assert jnp.allclose(out, ref, atol=2e-2, rtol=2e-2), "mismatch vs reference"

    print("KERNEL_OK")
</pallas_src>

<mosaic_0001>
module attributes {stable_mosaic.version = 11 : i64} {
  func.func @kernel(%arg0: i32, %arg1: memref<2x8x128xbf16, #tpu.memory_space<vmem>>, %arg2: memref<8x2048xbf16, #tpu.memory_space<vmem>>, %arg3: memref<1x2048xf32, #tpu.memory_space<vmem>>, %arg4: memref<2048x128xbf16, #tpu.memory_space<vmem>>, %arg5: memref<1x128xf32, #tpu.memory_space<vmem>>, %arg6: memref<1x128xf32, #tpu.memory_space<vmem>>, %arg7: memref<1x128xf32, #tpu.memory_space<vmem>>, %arg8: memref<2x128xf32, #tpu.memory_space<vmem>>, %arg9: memref<2x8xf32, #tpu.memory_space<vmem>>) attributes {dimension_semantics = [#tpu.dimension_semantics<arbitrary>], iteration_bounds = array<i64: 2>, scalar_prefetch = 0 : i64, scratch_operands = 1 : i64, tpu.core_type = #tpu.core_type<tc>, window_params = [{transform_indices = @transform_0, window_bounds = array<i64: 2, 8, 128>}, {pipeline_mode = #tpu.pipeline_mode<synchronous>, transform_indices = @transform_1, window_bounds = array<i64: 8, 2048>}, {pipeline_mode = #tpu.pipeline_mode<synchronous>, transform_indices = @transform_2, window_bounds = array<i64: 1, 2048>}, {pipeline_mode = #tpu.pipeline_mode<synchronous>, transform_indices = @transform_3, window_bounds = array<i64: 2048, 128>}, {pipeline_mode = #tpu.pipeline_mode<synchronous>, transform_indices = @transform_4, window_bounds = array<i64: 1, 128>}, {pipeline_mode = #tpu.pipeline_mode<synchronous>, transform_indices = @transform_5, window_bounds = array<i64: 1, 128>}, {pipeline_mode = #tpu.pipeline_mode<synchronous>, transform_indices = @transform_6, window_bounds = array<i64: 1, 128>}, {pipeline_mode = #tpu.pipeline_mode<synchronous>, transform_indices = @transform_7, window_bounds = array<i64: 2, 128>}]} {
    %c0_i32 = arith.constant 0 : i32
    %0 = arith.cmpi eq, %arg0, %c0_i32 : i32
    %1 = arith.extui %0 : i1 to i32
    %c0_i32_0 = arith.constant 0 : i32
    %2 = arith.cmpi ne, %1, %c0_i32_0 : i32
    scf.if %2 {
      %cst_8 = arith.constant 0.000000e+00 : f32
      %12 = vector.broadcast %cst_8 : f32 to vector<2x8xf32>
      %c0_9 = arith.constant 0 : index
      %c0_10 = arith.constant 0 : index
      %13 = vector.load %arg9[%c0_9, %c0_10] : memref<2x8xf32, #tpu.memory_space<vmem>>, vector<2x8xf32>
      tpu.vector_store %arg9[%c0_9, %c0_10], %12 {strides = array<i32>} : memref<2x8xf32, #tpu.memory_space<vmem>>, vector<2x8xf32>,
    } else {
    }
    %c0 = arith.constant 0 : index
    %c0_1 = arith.constant 0 : index
    %3 = vector.load %arg9[%c0, %c0_1] : memref<2x8xf32, #tpu.memory_space<vmem>>, vector<2x8xf32>
    %c0_2 = arith.constant 0 : index
    %c0_3 = arith.constant 0 : index
    %c0_4 = arith.constant 0 : index
    %4 = vector.load %arg1[%c0_2, %c0_3, %c0_4] : memref<2x8x128xbf16, #tpu.memory_space<vmem>>, vector<2x8x128xbf16>
    %5 = arith.extf %4 : vector<2x8x128xbf16> to vector<2x8x128xf32>
    %cst = arith.constant dense<0.000000e+00> : vector<2x8xf32>
    %6 = vector.multi_reduction <add>, %5, %cst [2] : vector<2x8x128xf32> to vector<2x8xf32>
    %7 = arith.addf %3, %6 : vector<2x8xf32>
    %c0_5 = arith.constant 0 : index
    %c0_6 = arith.constant 0 : index
    %8 = vector.load %arg9[%c0_5, %c0_6] : memref<2x8xf32, #tpu.memory_space<vmem>>, vector<2x8xf32>
    tpu.vector_store %arg9[%c0_5, %c0_6], %7 {strides = array<i32>} : memref<2x8xf32, #tpu.memory_space<vmem>>, vector<2x8xf32>,
    %c1_i32 = arith.constant 1 : i32
    %9 = arith.cmpi eq, %arg0, %c1_i32 : i32
    %10 = arith.extui %9 : i1 to i32
    %c0_i32_7 = arith.constant 0 : i32
    %11 = arith.cmpi ne, %10, %c0_i32_7 : i32
    scf.if %11 {
      %c0_8 = arith.constant 0 : index
      %c0_9 = arith.constant 0 : index
      %12 = vector.load %arg9[%c0_8, %c0_9] : memref<2x8xf32, #tpu.memory_space<vmem>>, vector<2x8xf32>
      %cst_10 = arith.constant 3.906250e-03 : f32
      %13 = vector.broadcast %cst_10 : f32 to vector<2x8xf32>
      %14 = arith.mulf %12, %13 : vector<2x8xf32>
      %15 = arith.truncf %14 : vector<2x8xf32> to vector<2x8xbf16>
      %c0_11 = arith.constant 0 : index
      %c0_12 = arith.constant 0 : index
      %16 = vector.load %arg2[%c0_11, %c0_12] : memref<8x2048xbf16, #tpu.memory_space<vmem>>, vector<8x2048xbf16>
      %cst_13 = arith.constant dense<0.000000e+00> : vector<2x2048xf32>
      %17 = tpu.matmul %15, %16, %cst_13 {dimension_numbers = #tpu.dot_dimension_numbers<[1], [0], [0], [1], [0, 0, 1, 1], [], []>} : vector<2x8xbf16>, vector<8x2048xbf16>, vector<2x2048xf32> -> vector<2x2048xf32>
      %c0_14 = arith.constant 0 : index
      %c0_15 = arith.constant 0 : index
      %18 = vector.load %arg3[%c0_14, %c0_15] : memref<1x2048xf32, #tpu.memory_space<vmem>>, vector<1x2048xf32>
      %19 = vector.broadcast %18 : vector<1x2048xf32> to vector<2x2048xf32>
      %20 = arith.addf %17, %19 : vector<2x2048xf32>
      %21 = arith.truncf %20 : vector<2x2048xf32> to vector<2x2048xbf16>
      %c0_16 = arith.constant 0 : index
      %c0_17 = arith.constant 0 : index
      %22 = vector.load %arg4[%c0_16, %c0_17] : memref<2048x128xbf16, #tpu.memory_space<vmem>>, vector<2048x128xbf16>
      %cst_18 = arith.constant dense<0.000000e+00> : vector<2x128xf32>
      %23 = tpu.matmul %21, %22, %cst_18 {dimension_numbers = #tpu.dot_dimension_numbers<[1], [0], [0], [1], [0, 0, 1, 1], [], []>} : vector<2x2048xbf16>, vector<2048x128xbf16>, vector<2x128xf32> -> vector<2x128xf32>
      %c0_19 = arith.constant 0 : index
      %c0_20 = arith.constant 0 : index
      %24 = vector.load %arg5[%c0_19, %c0_20] : memref<1x128xf32, #tpu.memory_space<vmem>>, vector<1x128xf32>
      %25 = vector.broadcast %24 : vector<1x128xf32> to vector<2x128xf32>
      %26 = arith.addf %23, %25 : vector<2x128xf32>
      %cst_21 = arith.constant dense<0.000000e+00> : vector<128xf32>
      %27 = vector.multi_reduction <add>, %26, %cst_21 [0] : vector<2x128xf32> to vector<128xf32>
      %28 = vector.shape_cast %27 : vector<128xf32> to vector<1x128xf32>
      %cst_22 = arith.constant 2.000000e+00 : f32
      %29 = vector.broadcast %cst_22 : f32 to vector<1x128xf32>
      %30 = arith.divf %28, %29 : vector<1x128xf32>
      %31 = arith.mulf %26, %26 : vector<2x128xf32>
      %cst_23 = arith.constant dense<0.000000e+00> : vector<128xf32>
      %32 = vector.multi_reduction <add>, %31, %cst_23 [0] : vector<2x128xf32> to vector<128xf32>
      %33 = vector.shape_cast %32 : vector<128xf32> to vector<1x128xf32>
      %cst_24 = arith.constant 2.000000e+00 : f32
      %34 = vector.broadcast %cst_24 : f32 to vector<1x128xf32>
      %35 = arith.divf %33, %34 : vector<1x128xf32>
      %36 = arith.mulf %30, %30 : vector<1x128xf32>
      %37 = arith.subf %35, %36 : vector<1x128xf32>
      %38 = vector.broadcast %30 : vector<1x128xf32> to vector<2x128xf32>
      %39 = arith.subf %26, %38 : vector<2x128xf32>
      %cst_25 = arith.constant 9.99999974E-6 : f32
      %40 = vector.broadcast %cst_25 : f32 to vector<1x128xf32>
      %41 = arith.addf %37, %40 : vector<1x128xf32>
      %42 = math.rsqrt %41 : vector<1x128xf32>
      %43 = vector.broadcast %42 : vector<1x128xf32> to vector<2x128xf32>
      %44 = arith.mulf %39, %43 : vector<2x128xf32>
      %c0_26 = arith.constant 0 : index
      %c0_27 = arith.constant 0 : index
      %45 = vector.load %arg6[%c0_26, %c0_27] : memref<1x128xf32, #tpu.memory_space<vmem>>, vector<1x128xf32>
      %46 = vector.broadcast %45 : vector<1x128xf32> to vector<2x128xf32>
      %47 = arith.mulf %44, %46 : vector<2x128xf32>
      %c0_28 = arith.constant 0 : index
      %c0_29 = arith.constant 0 : index
      %48 = vector.load %arg7[%c0_28, %c0_29] : memref<1x128xf32, #tpu.memory_space<vmem>>, vector<1x128xf32>
      %49 = vector.broadcast %48 : vector<1x128xf32> to vector<2x128xf32>
      %50 = arith.addf %47, %49 : vector<2x128xf32>
      %c0_30 = arith.constant 0 : index
      %c0_31 = arith.constant 0 : index
      %51 = vector.load %arg8[%c0_30, %c0_31] : memref<2x128xf32, #tpu.memory_space<vmem>>, vector<2x128xf32>
      tpu.vector_store %arg8[%c0_30, %c0_31], %50 {strides = array<i32>} : memref<2x128xf32, #tpu.memory_space<vmem>>, vector<2x128xf32>,
    } else {
    }
    return
  }
  func.func @transform_0(%arg0: i32) -> (i32, i32, i32) {
    %c0_i32 = arith.constant 0 : i32
    %c0_i32_0 = arith.constant 0 : i32
    %c0_i32_1 = arith.constant 0 : i32
    return %c0_i32, %c0_i32_0, %arg0 : i32, i32, i32
  }
  func.func @transform_1(%arg0: i32) -> (i32, i32) {
    %c0_i32 = arith.constant 0 : i32
    %c0_i32_0 = arith.constant 0 : i32
    %c0_i32_1 = arith.constant 0 : i32
    return %c0_i32, %c0_i32_0 : i32, i32
  }
  func.func @transform_2(%arg0: i32) -> (i32, i32) {
    %c0_i32 = arith.constant 0 : i32
    %c0_i32_0 = arith.constant 0 : i32
    %c0_i32_1 = arith.constant 0 : i32
    return %c0_i32, %c0_i32_0 : i32, i32
  }
  func.func @transform_3(%arg0: i32) -> (i32, i32) {
    %c0_i32 = arith.constant 0 : i32
    %c0_i32_0 = arith.constant 0 : i32
    %c0_i32_1 = arith.constant 0 : i32
    return %c0_i32, %c0_i32_0 : i32, i32
  }
  func.func @transform_4(%arg0: i32) -> (i32, i32) {
    %c0_i32 = arith.constant 0 : i32
    %c0_i32_0 = arith.constant 0 : i32
    %c0_i32_1 = arith.constant 0 : i32
    return %c0_i32, %c0_i32_0 : i32, i32
  }
  func.func @transform_5(%arg0: i32) -> (i32, i32) {
    %c0_i32 = arith.constant 0 : i32
    %c0_i32_0 = arith.constant 0 : i32
    %c0_i32_1 = arith.constant 0 : i32
    return %c0_i32, %c0_i32_0 : i32, i32
  }
  func.func @transform_6(%arg0: i32) -> (i32, i32) {
    %c0_i32 = arith.constant 0 : i32
    %c0_i32_0 = arith.constant 0 : i32
    %c0_i32_1 = arith.constant 0 : i32
    return %c0_i32, %c0_i32_0 : i32, i32
  }
  func.func @transform_7(%arg0: i32) -> (i32, i32) {
    %c0_i32 = arith.constant 0 : i32
    %c0_i32_0 = arith.constant 0 : i32
    %c0_i32_1 = arith.constant 0 : i32
    return %c0_i32, %c0_i32_0 : i32, i32
  }
}

</mosaic_0001>

<llo_original>
// kernel: tpu_custom_call.1
$region0: #{tpu_custom_call.1}
  #allocation0 [shape = 'u32[]', space=smem, size = 0x4, offset = 0x4, fixed_abs, tag = 'smem constant byte address 0x4 - core index']
  #allocation1 [shape = 'u32[144,128]{1,0:T(1,128)}', space=vmem, size = 0x12000, scoped, tag = 'internal scratch']
  #allocation2 [shape = 'f32[2,8]{1,0:T(2,128)}', space=vmem, size = 0x400, scoped, tag = 'scratch operand']
  %s0 = inlined_call_operand.hbm [shape: bf16[2,8,256], index: 0, kind: input, shape index: {}]
  %s1 = inlined_call_operand.hbm [shape: bf16[8,2048], index: 1, kind: input, shape index: {}]
  %s2 = inlined_call_operand.hbm [shape: f32[1,2048], index: 2, kind: input, shape index: {}]
  %s3 = inlined_call_operand.hbm [shape: bf16[2048,128], index: 3, kind: input, shape index: {}]
  %s4 = inlined_call_operand.vmem [shape: f32[1,128], index: 4, kind: input, shape index: {}]
  %s5 = inlined_call_operand.vmem [shape: f32[1,128], index: 5, kind: input, shape index: {}]
  %s6 = inlined_call_operand.vmem [shape: f32[1,128], index: 6, kind: input, shape index: {}]
  %s7 = inlined_call_operand.hbm [shape: f32[2,128], index: 7, kind: output, shape index: {}]
  %s8 = sld [smem:[#allocation0]]
  $region85: #{tpu_custom_call.1} parent=0
    _
  %s10 = ssub.s32 1, %s8
  %s11 = scalar_select 0, %s10, %s8
  $region1: #{tpu_custom_call.1} parent=0
    #allocation3 [shape = 'u8[8192]{0}', space=vmem, size = 0x2000, scoped, tag = 'input window, operand 0']
    #allocation4 [shape = 's32[2]{0}', space=sflag, size = 0x8, scoped, tag = 'scoped memory for tpu_custom_call.1']
    #allocation5 [shape = 's32[2]{0}', space=sflag, size = 0x8, scoped, tag = 'scoped memory for tpu_custom_call.1']
    #allocation6 [shape = 'u8[32768]{0}', space=vmem, size = 0x8000, scoped, tag = 'input window, operand 1, single buffered']
    #allocation7 [shape = 's32[1]{0}', space=sflag, size = 0x4, scoped, tag = 'scoped memory for tpu_custom_call.1']
    #allocation8 [shape = 'u8[8192]{0}', space=vmem, size = 0x2000, scoped, tag = 'input window, operand 2, single buffered']
    #allocation9 [shape = 'u8[524288]{0}', space=vmem, size = 0x80000, scoped, tag = 'input window, operand 3, single buffered']
    #allocation10 [shape = 's32[1]{0}', space=sflag, size = 0x4, scoped, tag = 'scoped memory for tpu_custom_call.1']
    #allocation11 [shape = 'u8[1024]{0}', space=vmem, size = 0x400, scoped, tag = 'output window, operand 0, single buffered']
    %12 = vsyncpa [#allocation4], 0
    %s13 = scalar_lea.sflag [#allocation4], 1
    %14 = vsyncpa %s13, 0
    %15 = vsyncpa [#allocation7], 0
    %16 = vsyncpa [#allocation10], 0
    %17 = vsyncpa [#allocation5], 0
    loop: start=0, step=1, limit=4
    $region2: #{tpu_custom_call.1} parent=1 // loop_pre_header
      _
    $region3: #{tpu_custom_call.1} parent=1 // loop_header
      %s19 = sphi 0, %s23
      %p20 = scmp.ge.s32.totalorder %s19, 4
      %s29 = sphi 0, %s31
      %s32 = sphi 0, %s29
      %s33 = sphi 0, %s32
      %s49 = sphi 0, %s33
      %s53 = sphi 0, %s53
      %s55 = sphi 0, %s53
      %s56 = sphi 0, %s55
      %s70 = sphi 0, %s56
      %s74 = sphi 0, %s74
      %s76 = sphi 0, %s74
      %s77 = sphi 0, %s76
      %s91 = sphi 0, %s77
      %s95 = sphi 0, %s95
      %s97 = sphi 0, %s95
      %s98 = sphi 0, %s97
      %s112 = sphi 0, %s98
      %s116 = sphi 0, %s116
      %s118 = sphi 0, %s116
      %s119 = sphi 0, %s118
      %s133 = sphi 0, %s119
      %s137 = sphi 0, %s137
      %s139 = sphi 0, %s137
      %s140 = sphi 0, %s139
      %s154 = sphi 0, %s140
      %s158 = sphi 0, %s158
      %s160 = sphi 0, %s158
      %s161 = sphi 0, %s160
      %s175 = sphi 0, %s161
      %s179 = sphi 0, %s179
      %s181 = sphi 0, %s179
      %s182 = sphi 0, %s181
      %s196 = sphi 0, %s182
    $region4: #{tpu_custom_call.1} parent=1 // loop_header_branch
      %22 = sbr.rel (%p20) target = $region8
    $region5: #{tpu_custom_call.1} parent=1 // loop_body
      %s24 = ssub.s32 %s19, 1
      %s25 = ssub.s32 %s19, 2
      %s26 = sadd.s32 %s19, 1
      %s27 = ssub.s32 %s19, %s26
      %p28 = scmp.eq.s32.totalorder %s27, 0
      %s30 = sadd.s32 %s29, 1
      %s31 = scalar_select %p28, %s29, %s30
      %p34 = pneg %p28
      %p35 = scmp.eq.s32.totalorder %s19, 1
      %p36 = por %p34, %p35
      %p37 = scmp.ne.s32.totalorder %s29, %s32
      %p38 = scmp.eq.s32.totalorder %s19, 0
      %p39 = por %p37, %p38
      %p40 = scmp.ne.s32.totalorder %s29, %s32
      %p41 = scmp.eq.s32.totalorder %s24, 1
      %p42 = por %p40, %p41
      %p43 = scmp.ne.s32.totalorder %s32, %s33
      %p44 = scmp.eq.s32.totalorder %s24, 0
      %p45 = por %p43, %p44
      %p46 = scmp.ne.s32.totalorder %s32, %s33
      %p47 = scmp.eq.s32.totalorder %s25, 1
      %p48 = por %p46, %p47
      %p50 = scmp.ne.s32.totalorder %s33, %s49
      %p51 = scmp.eq.s32.totalorder %s25, 0
      %p52 = por %p50, %p51
      %s54 = sadd.s32 %s53, 1
      %p57 = scmp.eq.s32.totalorder %s19, 1
      %p58 = scmp.ne.s32.totalorder %s53, %s55
      %p59 = scmp.eq.s32.totalorder %s19, 0
      %p60 = por %p58, %p59
      %p61 = scmp.ne.s32.totalorder %s53, %s55
      %p62 = scmp.eq.s32.totalorder %s24, 1
      %p63 = por %p61, %p62
      %p64 = scmp.ne.s32.totalorder %s55, %s56
      %p65 = scmp.eq.s32.totalorder %s24, 0
      %p66 = por %p64, %p65
      %p67 = scmp.ne.s32.totalorder %s55, %s56
      %p68 = scmp.eq.s32.totalorder %s25, 1
      %p69 = por %p67, %p68
      %p71 = scmp.ne.s32.totalorder %s56, %s70
      %p72 = scmp.eq.s32.totalorder %s25, 0
      %p73 = por %p71, %p72
      %s75 = sadd.s32 %s74, 1
      %p78 = scmp.eq.s32.totalorder %s19, 1
      %p79 = scmp.ne.s32.totalorder %s74, %s76
      %p80 = scmp.eq.s32.totalorder %s19, 0
      %p81 = por %p79, %p80
      %p82 = scmp.ne.s32.totalorder %s74, %s76
      %p83 = scmp.eq.s32.totalorder %s24, 1
      %p84 = por %p82, %p83
      %p85 = scmp.ne.s32.totalorder %s76, %s77
      %p86 = scmp.eq.s32.totalorder %s24, 0
      %p87 = por %p85, %p86
      %p88 = scmp.ne.s32.totalorder %s76, %s77
      %p89 = scmp.eq.s32.totalorder %s25, 1
      %p90 = por %p88, %p89
      %p92 = scmp.ne.s32.totalorder %s77, %s91
      %p93 = scmp.eq.s32.totalorder %s25, 0
      %p94 = por %p92, %p93
      %s96 = sadd.s32 %s95, 1
      %p99 = scmp.eq.s32.totalorder %s19, 1
      %p100 = scmp.ne.s32.totalorder %s95, %s97
      %p101 = scmp.eq.s32.totalorder %s19, 0
      %p102 = por %p100, %p101
      %p103 = scmp.ne.s32.totalorder %s95, %s97
      %p104 = scmp.eq.s32.totalorder %s24, 1
      %p105 = por %p103, %p104
      %p106 = scmp.ne.s32.totalorder %s97, %s98
      %p107 = scmp.eq.s32.totalorder %s24, 0
      %p108 = por %p106, %p107
      %p109 = scmp.ne.s32.totalorder %s97, %s98
      %p110 = scmp.eq.s32.totalorder %s25, 1
      %p111 = por %p109, %p110
      %p113 = scmp.ne.s32.totalorder %s98, %s112
      %p114 = scmp.eq.s32.totalorder %s25, 0
      %p115 = por %p113, %p114
      %s117 = sadd.s32 %s116, 1
      %p120 = scmp.eq.s32.totalorder %s19, 1
      %p121 = scmp.ne.s32.totalorder %s116, %s118
      %p122 = scmp.eq.s32.totalorder %s19, 0
      %p123 = por %p121, %p122
      %p124 = scmp.ne.s32.totalorder %s116, %s118
      %p125 = scmp.eq.s32.totalorder %s24, 1
      %p126 = por %p124, %p125
      %p127 = scmp.ne.s32.totalorder %s118, %s119
      %p128 = scmp.eq.s32.totalorder %s24, 0
      %p129 = por %p127, %p128
      %p130 = scmp.ne.s32.totalorder %s118, %s119
      %p131 = scmp.eq.s32.totalorder %s25, 1
      %p132 = por %p130, %p131
      %p134 = scmp.ne.s32.totalorder %s119, %s133
      %p135 = scmp.eq.s32.totalorder %s25, 0
      %p136 = por %p134, %p135
      %s138 = sadd.s32 %s137, 1
      %p141 = scmp.eq.s32.totalorder %s19, 1
      %p142 = scmp.ne.s32.totalorder %s137, %s139
      %p143 = scmp.eq.s32.totalorder %s19, 0
      %p144 = por %p142, %p143
      %p145 = scmp.ne.s32.totalorder %s137, %s139
      %p146 = scmp.eq.s32.totalorder %s24, 1
      %p147 = por %p145, %p146
      %p148 = scmp.ne.s32.totalorder %s139, %s140
      %p149 = scmp.eq.s32.totalorder %s24, 0
      %p150 = por %p148, %p149
      %p151 = scmp.ne.s32.totalorder %s139, %s140
      %p152 = scmp.eq.s32.totalorder %s25, 1
      %p153 = por %p151, %p152
      %p155 = scmp.ne.s32.totalorder %s140, %s154
      %p156 = scmp.eq.s32.totalorder %s25, 0
      %p157 = por %p155, %p156
      %s159 = sadd.s32 %s158, 1
      %p162 = scmp.eq.s32.totalorder %s19, 1
      %p163 = scmp.ne.s32.totalorder %s158, %s160
      %p164 = scmp.eq.s32.totalorder %s19, 0
      %p165 = por %p163, %p164
      %p166 = scmp.ne.s32.totalorder %s158, %s160
      %p167 = scmp.eq.s32.totalorder %s24, 1
      %p168 = por %p166, %p167
      %p169 = scmp.ne.s32.totalorder %s160, %s161
      %p170 = scmp.eq.s32.totalorder %s24, 0
      %p171 = por %p169, %p170
      %p172 = scmp.ne.s32.totalorder %s160, %s161
      %p173 = scmp.eq.s32.totalorder %s25, 1
      %p174 = por %p172, %p173
      %p176 = scmp.ne.s32.totalorder %s161, %s175
      %p177 = scmp.eq.s32.totalorder %s25, 0
      %p178 = por %p176, %p177
      %s180 = sadd.s32 %s179, 1
      %p183 = scmp.eq.s32.totalorder %s19, 1
      %p184 = scmp.ne.s32.totalorder %s179, %s181
      %p185 = scmp.eq.s32.totalorder %s19, 0
      %p186 = por %p184, %p185
      %p187 = scmp.ne.s32.totalorder %s179, %s181
      %p188 = scmp.eq.s32.totalorder %s24, 1
      %p189 = por %p187, %p188
      %p190 = scmp.ne.s32.totalorder %s181, %s182
      %p191 = scmp.eq.s32.totalorder %s24, 0
      %p192 = por %p190, %p191
      %p193 = scmp.ne.s32.totalorder %s181, %s182
      %p194 = scmp.eq.s32.totalorder %s25, 1
      %p195 = por %p193, %p194
      %p197 = scmp.ne.s32.totalorder %s182, %s196
      %p198 = scmp.eq.s32.totalorder %s25, 0
      %p199 = por %p197, %p198
      %p200 = scmp.le.s32.totalorder 1, %s19
      %p201 = scmp.lt.s32.totalorder %s19, 3
      %p202 = pnand %p200, %p201
      %p203 = pneg %p202
      // Predicated region
      $region9: #{tpu_custom_call.1} parent=5 // pred_check
        _
      $region10: #{tpu_custom_call.1} parent=5 // pred_check_branch
        %205 = sbr.rel (%p202) target = $region12
      $region11: #{tpu_custom_call.1} parent=5 // pred_region
        %s206 = ssub.s32 %s19, 1
        // Predicated region
        $region13: #{tpu_custom_call.1} parent=11 // pred_check
          %p207 = pneg %p66
        $region14: #{tpu_custom_call.1} parent=11 // pred_check_branch
          %209 = sbr.rel (%p207) target = $region16
        $region15: #{tpu_custom_call.1} parent=11 // pred_region
          %s211 = ssub.s32 1024, 1024
          %212 = vsyncadd [#allocation7], %s211
          %s214 = sshll.u32 [#allocation6], 4
          %s215 = int_to_ptr.vmem [resolvable:$true] %s214
          %217 = dma.hbm_to_vmem [thread:$0]  %s1, 1024, %s215, [#allocation7]
        $region16: #{tpu_custom_call.1} parent=11 // pred_fallthru
          _
        // Predicated region
        $region17: #{tpu_custom_call.1} parent=11 // pred_check
          %p218 = pneg %p87
        $region18: #{tpu_custom_call.1} parent=11 // pred_check_branch
          %220 = sbr.rel (%p218) target = $region20
        $region19: #{tpu_custom_call.1} parent=11 // pred_region
          %s222 = ssub.s32 256, 256
          %223 = vsyncadd [#allocation7], %s222
          %s225 = sshll.u32 [#allocation8], 4
          %s226 = int_to_ptr.vmem [resolvable:$true] %s225
          %228 = dma.hbm_to_vmem [thread:$0]  %s2, 256, %s226, [#allocation7]
        $region20: #{tpu_custom_call.1} parent=11 // pred_fallthru
          _
        // Predicated region
        $region21: #{tpu_custom_call.1} parent=11 // pred_check
          %p229 = pneg %p108
        $region22: #{tpu_custom_call.1} parent=11 // pred_check_branch
          %231 = sbr.rel (%p229) target = $region24
        $region23: #{tpu_custom_call.1} parent=11 // pred_region
          %s233 = ssub.s32 16384, 16384
          %234 = vsyncadd [#allocation10], %s233
          %s235 = sshll.u32 [#allocation9], 4
          %s236 = int_to_ptr.vmem [resolvable:$true] %s235
          %241 = dma.hbm_to_vmem [thread:$0]  %s3, 16384, %s236, [#allocation10], 64, 64, 4
        $region24: #{tpu_custom_call.1} parent=11 // pred_fallthru
          _
        // Predicated region
        $region25: #{tpu_custom_call.1} parent=11 // pred_check
          %p242 = pneg %p129
        $region26: #{tpu_custom_call.1} parent=11 // pred_check_branch
          %244 = sbr.rel (%p242) target = $region28
        $region27: #{tpu_custom_call.1} parent=11 // pred_region
          _
        $region28: #{tpu_custom_call.1} parent=11 // pred_fallthru
          _
        // Predicated region
        $region29: #{tpu_custom_call.1} parent=11 // pred_check
          %p245 = pneg %p150
        $region30: #{tpu_custom_call.1} parent=11 // pred_check_branch
          %247 = sbr.rel (%p245) target = $region32
        $region31: #{tpu_custom_call.1} parent=11 // pred_region
          _
        $region32: #{tpu_custom_call.1} parent=11 // pred_fallthru
          _
        // Predicated region
        $region33: #{tpu_custom_call.1} parent=11 // pred_check
          %p248 = pneg %p171
        $region34: #{tpu_custom_call.1} parent=11 // pred_check_branch
          %250 = sbr.rel (%p248) target = $region36
        $region35: #{tpu_custom_call.1} parent=11 // pred_region
          _
        $region36: #{tpu_custom_call.1} parent=11 // pred_fallthru
          _
      $region12: #{tpu_custom_call.1} parent=5 // pred_fallthru
        _
      %p251 = scmp.lt.s32.totalorder %s19, 2
      // Predicated region
      $region37: #{tpu_custom_call.1} parent=5 // pred_check
        %p252 = pneg %p251
      $region38: #{tpu_custom_call.1} parent=5 // pred_check_branch
        %254 = sbr.rel (%p252) target = $region40
      $region39: #{tpu_custom_call.1} parent=5 // pred_region
        // Predicated region
        $region41: #{tpu_custom_call.1} parent=39 // pred_check
          %p255 = pneg %p39
        $region42: #{tpu_custom_call.1} parent=39 // pred_check_branch
          %257 = sbr.rel (%p255) target = $region44
        $region43: #{tpu_custom_call.1} parent=39 // pred_region
          %s258 = sand.u32 %s29, 1
          %s259 = scalar_lea.sflag [#allocation4], %s258
          %s260 = sand.u32 %s29, 1
          %s261 = smul.addr %s260, 8
          %s262 = scalar_lea.vmem [#allocation3], %s261
          %s264 = ssub.s32 128, 128
          %265 = vsyncadd %s259, %s264
          %s266 = smul.addr %s19, 64
          %s267 = scalar_lea.hbm %s0, %s266
          %s268 = sshll.u32 %s262, 4
          %s269 = int_to_ptr.vmem [resolvable:$true] %s268
          %274 = dma.hbm_to_vmem [thread:$0]  %s267, 128, %s269, %s259, 128, 64, 4
        $region44: #{tpu_custom_call.1} parent=39 // pred_fallthru
          _
      $region40: #{tpu_custom_call.1} parent=5 // pred_fallthru
        _
      %p275 = scmp.le.s32.totalorder 1, %s19
      %p276 = scmp.lt.s32.totalorder %s19, 3
      %p277 = pnand %p275, %p276
      %p278 = pneg %p277
      // Predicated region
      $region45: #{tpu_custom_call.1} parent=5 // pred_check
        _
      $region46: #{tpu_custom_call.1} parent=5 // pred_check_branch
        %280 = sbr.rel (%p277) target = $region48
      $region47: #{tpu_custom_call.1} parent=5 // pred_region
        %s281 = ssub.s32 %s19, 1
        %s282 = sand.u32 %s32, 1
        %s283 = scalar_lea.sflag [#allocation4], %s282
        %s284 = sand.u32 %s32, 1
        %s285 = smul.addr %s284, 8
        %s286 = scalar_lea.vmem [#allocation3], %s285
        // Predicated region
        $region49: #{tpu_custom_call.1} parent=47 // pred_check
          %p287 = pneg %p45
        $region50: #{tpu_custom_call.1} parent=47 // pred_check_branch
          %289 = sbr.rel (%p287) target = $region52
        $region51: #{tpu_custom_call.1} parent=47 // pred_region
          %290 = dma.done %s283, 128
        $region52: #{tpu_custom_call.1} parent=47 // pred_fallthru
          _
        // Predicated region
        $region53: #{tpu_custom_call.1} parent=47 // pred_check
          %p291 = pneg %p66
        $region54: #{tpu_custom_call.1} parent=47 // pred_check_branch
          %293 = sbr.rel (%p291) target = $region56
        $region55: #{tpu_custom_call.1} parent=47 // pred_region
          %294 = dma.done [#allocation7], 1024
        $region56: #{tpu_custom_call.1} parent=47 // pred_fallthru
          _
        // Predicated region
        $region57: #{tpu_custom_call.1} parent=47 // pred_check
          %p295 = pneg %p87
        $region58: #{tpu_custom_call.1} parent=47 // pred_check_branch
          %297 = sbr.rel (%p295) target = $region60
        $region59: #{tpu_custom_call.1} parent=47 // pred_region
          %298 = dma.done [#allocation7], 256
        $region60: #{tpu_custom_call.1} parent=47 // pred_fallthru
          _
        // Predicated region
        $region61: #{tpu_custom_call.1} parent=47 // pred_check
          %p299 = pneg %p108
        $region62: #{tpu_custom_call.1} parent=47 // pred_check_branch
          %301 = sbr.rel (%p299) target = $region64
        $region63: #{tpu_custom_call.1} parent=47 // pred_region
          %302 = dma.done [#allocation10], 16384
        $region64: #{tpu_custom_call.1} parent=47 // pred_fallthru
          _
        %s303 = sand.u32 %s32, 1
        %s304 = scalar_lea.sflag [#allocation4], %s303
        %s305 = sand.u32 %s32, 1
        %s306 = smul.addr %s305, 8
        %s307 = scalar_lea.vmem [#allocation3], %s306
        %p308 = pneg %p45
        %p309 = pneg %p42
        %p310 = pneg %p66
        %p311 = pneg %p63
        %p312 = pneg %p87
        %p313 = pneg %p84
        %p314 = pneg %p108
        %p315 = pneg %p105
        %p316 = pneg %p129
        %p317 = pneg %p126
        %p318 = pneg %p150
        %p319 = pneg %p147
        %p320 = pneg %p171
        %p321 = pneg %p168
        %p322 = pneg %p192
        %p323 = pneg %p189
        %p325 = scmp.eq.s32.totalorder %s24, 0
        // Predicated region
        $region65: #{tpu_custom_call.1} parent=47 // pred_check
          %p326 = pneg %p325
        $region66: #{tpu_custom_call.1} parent=47 // pred_check_branch
          %328 = sbr.rel (%p326) target = $region68
        $region67: #{tpu_custom_call.1} parent=47 // pred_region
          %vm329 = vcmask 58368
          %330 = vst.msk [vmem:[#allocation2] sm:$0x3] %vm329, 0.0
        $region68: #{tpu_custom_call.1} parent=47 // pred_fallthru
          _
        %v331 = vld [vmem:[#allocation2] sm:$0x3]
        %v332 = vld [vmem:[%s286] sm:$0xf]
        %v333 = vld [vmem:[%s286 + $0x4] sm:$0xf]
        %v334 = vunpack.c.l.bf16 %v332
        %v335 = vunpack.c.l.bf16 %v333
        %336 = vadd.xlane.f32.xlu0 %v334
        %v337 = vpop.xlane.xlu0 %336
        %338 = vadd.xlane.f32.xlu0 %v335
        %v339 = vpop.xlane.xlu0 %338
        %v342 = vlaneseq
        %v343 = vand.u32 %v342, 127
        %v344 = vlaneseq
        %v345 = vshrl.u32 %v344, 7
        %v346 = vsub.s32 %v343, %v345
        %v347 = vrot.slane %v337, %v346
        %v348 = vlaneseq
        %v349 = vshrl.u32 %v348, 7
        %v350 = vsub.s32 %v343, %v349
        %v351 = vrot.slane %v339, %v350
        %vm352 = vcmask 1041409
        %v353 = vsel %vm352, %v351, %v347
        %v355 = vadd.f32 %v331, %v353
        %vm356 = vcmask 58368
        %357 = vst.msk [vmem:[#allocation2] sm:$0x3] %vm356, %v355
        %p358 = scmp.eq.s32.totalorder %s24, 1
        // Predicated region
        $region69: #{tpu_custom_call.1} parent=47 // pred_check
          %p359 = pneg %p358
        $region70: #{tpu_custom_call.1} parent=47 // pred_check_branch
          %361 = sbr.rel (%p359) target = $region72
        $region71: #{tpu_custom_call.1} parent=47 // pred_region
          %v362 = vld [vmem:[#allocation2] sm:$0x3]
          %v363 = vmul.f32 %v362, 0.00390625
          %v364 = vpack.c.bf16 %v363, %v363
          %v365 = vld [vmem:[#allocation6] sm:$0xff]
          %v366 = vld [vmem:[#allocation6 + $0x8] sm:$0xff]
          %v367 = vld [vmem:[#allocation6 + $0x10] sm:$0xff]
          %v368 = vld [vmem:[#allocation6 + $0x18] sm:$0xff]
          %v369 = vld [vmem:[#allocation6 + $0x20] sm:$0xff]
          %v370 = vld [vmem:[#allocation6 + $0x28] sm:$0xff]
          %v371 = vld [vmem:[#allocation6 + $0x30] sm:$0xff]
          %v372 = vld [vmem:[#allocation6 + $0x38] sm:$0xff]
          %v373 = vld [vmem:[#allocation8] sm:$0xff]
          %v374 = vld [vmem:[#allocation8 + $0x8] sm:$0xff]
          %v377 = vlaneseq
          %v378 = vshrl.u32 %v377, 7
          %v379 = vsub.s32 0, %v378
          %v380 = vrot.slane %v373, %v379
          %v381 = vlaneseq
          %v382 = vshrl.u32 %v381, 7
          %v383 = vsub.s32 1, %v382
          %v384 = vrot.slane %v373, %v383
          %v385 = vlaneseq
          %v386 = vshrl.u32 %v385, 7
          %v387 = vsub.s32 2, %v386
          %v388 = vrot.slane %v373, %v387
          %v389 = vlaneseq
          %v390 = vshrl.u32 %v389, 7
          %v391 = vsub.s32 3, %v390
          %v392 = vrot.slane %v373, %v391
          %v393 = vlaneseq
          %v394 = vshrl.u32 %v393, 7
          %v395 = vsub.s32 4, %v394
          %v396 = vrot.slane %v373, %v395
          %v397 = vlaneseq
          %v398 = vshrl.u32 %v397, 7
          %v399 = vsub.s32 5, %v398
          %v400 = vrot.slane %v373, %v399
          %v401 = vlaneseq
          %v402 = vshrl.u32 %v401, 7
          %v403 = vsub.s32 6, %v402
          %v404 = vrot.slane %v373, %v403
          %v405 = vlaneseq
          %v406 = vshrl.u32 %v405, 7
          %v407 = vsub.s32 7, %v406
          %v408 = vrot.slane %v373, %v407
          %v409 = vlaneseq
          %v410 = vshrl.u32 %v409, 7
          %v411 = vsub.s32 0, %v410
          %v412 = vrot.slane %v374, %v411
          %v413 = vlaneseq
          %v414 = vshrl.u32 %v413, 7
          %v415 = vsub.s32 1, %v414
          %v416 = vrot.slane %v374, %v415
          %v417 = vlaneseq
          %v418 = vshrl.u32 %v417, 7
          %v419 = vsub.s32 2, %v418
          %v420 = vrot.slane %v374, %v419
          %v421 = vlaneseq
          %v422 = vshrl.u32 %v421, 7
          %v423 = vsub.s32 3, %v422
          %v424 = vrot.slane %v374, %v423
          %v425 = vlaneseq
          %v426 = vshrl.u32 %v425, 7
          %v427 = vsub.s32 4, %v426
          %v428 = vrot.slane %v374, %v427
          %v429 = vlaneseq
          %v430 = vshrl.u32 %v429, 7
          %v431 = vsub.s32 5, %v430
          %v432 = vrot.slane %v374, %v431
          %v433 = vlaneseq
          %v434 = vshrl.u32 %v433, 7
          %v435 = vsub.s32 6, %v434
          %v436 = vrot.slane %v374, %v435
          %v437 = vlaneseq
          %v438 = vshrl.u32 %v437, 7
          %v439 = vsub.s32 7, %v438
          %v440 = vrot.slane %v374, %v439
          %v465 = vunpack.c.l.b16 %v365
          %v466 = vunpack.c.h.b16 %v365
          %v467 = vunpack.c.l.b16 %v366
          %v468 = vunpack.c.h.b16 %v366
          %v469 = vunpack.c.l.b16 %v367
          %v470 = vunpack.c.h.b16 %v367
          %v471 = vunpack.c.l.b16 %v368
          %v472 = vunpack.c.h.b16 %v368
          %v473 = vunpack.c.l.b16 %v369
          %v474 = vunpack.c.h.b16 %v369
          %v475 = vunpack.c.l.b16 %v370
          %v476 = vunpack.c.h.b16 %v370
          %v477 = vunpack.c.l.b16 %v371
          %v478 = vunpack.c.h.b16 %v371
          %v479 = vunpack.c.l.b16 %v372
          %v480 = vunpack.c.h.b16 %v372
          %v481 = vpack.c.b16 %v465, %v465
          %v482 = vpack.c.b16 %v466, %v466
          %v483 = vpack.c.b16 %v467, %v467
          %v484 = vpack.c.b16 %v468, %v468
          %v485 = vpack.c.b16 %v469, %v469
          %v486 = vpack.c.b16 %v470, %v470
          %v487 = vpack.c.b16 %v471, %v471
          %v488 = vpack.c.b16 %v472, %v472
          %v489 = vpack.c.b16 %v473, %v473
          %v490 = vpack.c.b16 %v474, %v474
          %v491 = vpack.c.b16 %v475, %v475
          %v492 = vpack.c.b16 %v476, %v476
          %v493 = vpack.c.b16 %v477, %v477
          %v494 = vpack.c.b16 %v478, %v478
          %v495 = vpack.c.b16 %v479, %v479
          %v496 = vpack.c.b16 %v480, %v480
          %vm497 = vcmask 64512
          %v499 = vsel %vm497, %v364, 0
          %vm501 = vcmask 1043456
          %v503 = vsel %vm501, %v481, 0
          %v506 = vsel %vm501, %v482, 0
          %v509 = vsel %vm501, %v483, 0
          %v512 = vsel %vm501, %v484, 0
          %v515 = vsel %vm501, %v485, 0
          %v518 = vsel %vm501, %v486, 0
          %v521 = vsel %vm501, %v487, 0
          %v524 = vsel %vm501, %v488, 0
          %v527 = vsel %vm501, %v489, 0
          %v530 = vsel %vm501, %v490, 0
          %v533 = vsel %vm501, %v491, 0
          %v536 = vsel %vm501, %v492, 0
          %v539 = vsel %vm501, %v493, 0
          %v542 = vsel %vm501, %v494, 0
          %v545 = vsel %vm501, %v495, 0
          %v548 = vsel %vm501, %v496, 0
          %550 = vmatprep.subr.bf16.mxu0 0
          %551 = vmatpush1.bf16.msra.mxu0 0
          %552 = vmatprep.subr.bf16.mxu0 0
          %553 = vmatpush1.bf16.msra.mxu0 0
          %554 = vmatprep.subr.bf16.mxu0 0
          %555 = vmatpush1.bf16.msra.mxu0 0
          %556 = vmatprep.subr.bf16.mxu0 0
          %557 = vmatpush1.bf16.msra.mxu0 0
          %558 = vmatprep.subr.bf16.mxu0 0
          %559 = vmatpush1.bf16.msra.mxu0 0
          %560 = vmatprep.subr.bf16.mxu0 0
          %561 = vmatpush1.bf16.msra.mxu0 0
          %562 = vmatprep.subr.bf16.mxu0 0
          %563 = vmatpush1.bf16.msra.mxu0 0
          %564 = vmatprep.subr.bf16.mxu0 %v506
          %565 = vmatpush1.bf16.msra.mxu0 %v503
          %566 = vmatprep.subr.bf16.mxu0 0
          %567 = vmatpush2.bf16.msra.mxu0 0
          %568 = vmatprep.subr.bf16.mxu0 0
          %569 = vmatpush2.bf16.msra.mxu0 0
          %570 = vmatprep.subr.bf16.mxu0 0
          %571 = vmatpush2.bf16.msra.mxu0 0
          %572 = vmatprep.subr.bf16.mxu0 0
          %573 = vmatpush2.bf16.msra.mxu0 0
          %574 = vmatprep.subr.bf16.mxu0 0
          %575 = vmatpush2.bf16.msra.mxu0 0
          %576 = vmatprep.subr.bf16.mxu0 0
          %577 = vmatpush2.bf16.msra.mxu0 0
          %578 = vmatprep.subr.bf16.mxu0 0
          %579 = vmatpush2.bf16.msra.mxu0 0
          %580 = vmatprep.subr.bf16.mxu0 0
          %581 = vmatpush2.bf16.msra.mxu0 0
          %582 = vmatprep.mubr.bf16.mxu0 0
          %583 = vmatmul.mubr.bf16.gmra.mxu0 %v499
          %v584 = vpop.f32.mrf.mxu0
          %v585 = vadd.f32 %v380, %v584
          %v586 = vpop.f32.mrf.mxu0
          %v587 = vadd.f32 %v384, %v586
          %v588 = vpop.f32.mrf.mxu0
          %v589 = vpop.f32.mrf.mxu0
          %590 = vdwg.mxu0
          %591 = vmatprep.subr.bf16.mxu0 0
          %592 = vmatpush1.bf16.msra.mxu0 0
          %593 = vmatprep.subr.bf16.mxu0 0
          %594 = vmatpush1.bf16.msra.mxu0 0
          %595 = vmatprep.subr.bf16.mxu0 0
          %596 = vmatpush1.bf16.msra.mxu0 0
          %597 = vmatprep.subr.bf16.mxu0 0
          %598 = vmatpush1.bf16.msra.mxu0 0
          %599 = vmatprep.subr.bf16.mxu0 0
          %600 = vmatpush1.bf16.msra.mxu0 0
          %601 = vmatprep.subr.bf16.mxu0 0
          %602 = vmatpush1.bf16.msra.mxu0 0
          %603 = vmatprep.subr.bf16.mxu0 0
          %604 = vmatpush1.bf16.msra.mxu0 0
          %605 = vmatprep.subr.bf16.mxu0 %v512
          %606 = vmatpush1.bf16.msra.mxu0 %v509
          %607 = vmatprep.subr.bf16.mxu0 0
          %608 = vmatpush2.bf16.msra.mxu0 0
          %609 = vmatprep.subr.bf16.mxu0 0
          %610 = vmatpush2.bf16.msra.mxu0 0
          %611 = vmatprep.subr.bf16.mxu0 0
          %612 = vmatpush2.bf16.msra.mxu0 0
          %613 = vmatprep.subr.bf16.mxu0 0
          %614 = vmatpush2.bf16.msra.mxu0 0
          %615 = vmatprep.subr.bf16.mxu0 0
          %616 = vmatpush2.bf16.msra.mxu0 0
          %617 = vmatprep.subr.bf16.mxu0 0
          %618 = vmatpush2.bf16.msra.mxu0 0
          %619 = vmatprep.subr.bf16.mxu0 0
          %620 = vmatpush2.bf16.msra.mxu0 0
          %621 = vmatprep.subr.bf16.mxu0 0
          %622 = vmatpush2.bf16.msra.mxu0 0
          %623 = vmatprep.mubr.bf16.mxu0 0
          %624 = vmatmul.mubr.bf16.gmra.mxu0 %v499
          %v625 = vpop.f32.mrf.mxu0
          %v626 = vadd.f32 %v388, %v625
          %v627 = vpop.f32.mrf.mxu0
          %v628 = vadd.f32 %v392, %v627
          %v629 = vpop.f32.mrf.mxu0
          %v630 = vpop.f32.mrf.mxu0
          %631 = vdwg.mxu0
          %632 = vmatprep.subr.bf16.mxu0 0
          %633 = vmatpush1.bf16.msra.mxu0 0
          %634 = vmatprep.subr.bf16.mxu0 0
          %635 = vmatpush1.bf16.msra.mxu0 0
          %636 = vmatprep.subr.bf16.mxu0 0
          %637 = vmatpush1.bf16.msra.mxu0 0
          %638 = vmatprep.subr.bf16.mxu0 0
          %639 = vmatpush1.bf16.msra.mxu0 0
          %640 = vmatprep.subr.bf16.mxu0 0
          %641 = vmatpush1.bf16.msra.mxu0 0
          %642 = vmatprep.subr.bf16.mxu0 0
          %643 = vmatpush1.bf16.msra.mxu0 0
          %644 = vmatprep.subr.bf16.mxu0 0
          %645 = vmatpush1.bf16.msra.mxu0 0
          %646 = vmatprep.subr.bf16.mxu0 %v518
          %647 = vmatpush1.bf16.msra.mxu0 %v515
          %648 = vmatprep.subr.bf16.mxu0 0
          %649 = vmatpush2.bf16.msra.mxu0 0
          %650 = vmatprep.subr.bf16.mxu0 0
          %651 = vmatpush2.bf16.msra.mxu0 0
          %652 = vmatprep.subr.bf16.mxu0 0
          %653 = vmatpush2.bf16.msra.mxu0 0
          %654 = vmatprep.subr.bf16.mxu0 0
          %655 = vmatpush2.bf16.msra.mxu0 0
          %656 = vmatprep.subr.bf16.mxu0 0
          %657 = vmatpush2.bf16.msra.mxu0 0
          %658 = vmatprep.subr.bf16.mxu0 0
          %659 = vmatpush2.bf16.msra.mxu0 0
          %660 = vmatprep.subr.bf16.mxu0 0
          %661 = vmatpush2.bf16.msra.mxu0 0
          %662 = vmatprep.subr.bf16.mxu0 0
          %663 = vmatpush2.bf16.msra.mxu0 0
          %664 = vmatprep.mubr.bf16.mxu0 0
          %665 = vmatmul.mubr.bf16.gmra.mxu0 %v499
          %v666 = vpop.f32.mrf.mxu0
          %v667 = vadd.f32 %v396, %v666
          %v668 = vpop.f32.mrf.mxu0
          %v669 = vadd.f32 %v400, %v668
          %v670 = vpop.f32.mrf.mxu0
          %v671 = vpop.f32.mrf.mxu0
          %672 = vdwg.mxu0
          %673 = vmatprep.subr.bf16.mxu0 0
          %674 = vmatpush1.bf16.msra.mxu0 0
          %675 = vmatprep.subr.bf16.mxu0 0
          %676 = vmatpush1.bf16.msra.mxu0 0
          %677 = vmatprep.subr.bf16.mxu0 0
          %678 = vmatpush1.bf16.msra.mxu0 0
          %679 = vmatprep.subr.bf16.mxu0 0
          %680 = vmatpush1.bf16.msra.mxu0 0
          %681 = vmatprep.subr.bf16.mxu0 0
          %682 = vmatpush1.bf16.msra.mxu0 0
          %683 = vmatprep.subr.bf16.mxu0 0
          %684 = vmatpush1.bf16.msra.mxu0 0
          %685 = vmatprep.subr.bf16.mxu0 0
          %686 = vmatpush1.bf16.msra.mxu0 0
          %687 = vmatprep.subr.bf16.mxu0 %v524
          %688 = vmatpush1.bf16.msra.mxu0 %v521
          %689 = vmatprep.subr.bf16.mxu0 0
          %690 = vmatpush2.bf16.msra.mxu0 0
          %691 = vmatprep.subr.bf16.mxu0 0
          %692 = vmatpush2.bf16.msra.mxu0 0
          %693 = vmatprep.subr.bf16.mxu0 0
          %694 = vmatpush2.bf16.msra.mxu0 0
          %695 = vmatprep.subr.bf16.mxu0 0
          %696 = vmatpush2.bf16.msra.mxu0 0
          %697 = vmatprep.subr.bf16.mxu0 0
          %698 = vmatpush2.bf16.msra.mxu0 0
          %699 = vmatprep.subr.bf16.mxu0 0
          %700 = vmatpush2.bf16.msra.mxu0 0
          %701 = vmatprep.subr.bf16.mxu0 0
          %702 = vmatpush2.bf16.msra.mxu0 0
          %703 = vmatprep.subr.bf16.mxu0 0
          %704 = vmatpush2.bf16.msra.mxu0 0
          %705 = vmatprep.mubr.bf16.mxu0 0
          %706 = vmatmul.mubr.bf16.gmra.mxu0 %v499
          %v707 = vpop.f32.mrf.mxu0
          %v708 = vadd.f32 %v404, %v707
          %v709 = vpop.f32.mrf.mxu0
          %v710 = vadd.f32 %v408, %v709
          %v711 = vpop.f32.mrf.mxu0
          %v712 = vpop.f32.mrf.mxu0
          %713 = vdwg.mxu0
          %714 = vmatprep.subr.bf16.mxu0 0
          %715 = vmatpush1.bf16.msra.mxu0 0
          %716 = vmatprep.subr.bf16.mxu0 0
          %717 = vmatpush1.bf16.msra.mxu0 0
          %718 = vmatprep.subr.bf16.mxu0 0
          %719 = vmatpush1.bf16.msra.mxu0 0
          %720 = vmatprep.subr.bf16.mxu0 0
          %721 = vmatpush1.bf16.msra.mxu0 0
          %722 = vmatprep.subr.bf16.mxu0 0
          %723 = vmatpush1.bf16.msra.mxu0 0
          %724 = vmatprep.subr.bf16.mxu0 0
          %725 = vmatpush1.bf16.msra.mxu0 0
          %726 = vmatprep.subr.bf16.mxu0 0
          %727 = vmatpush1.bf16.msra.mxu0 0
          %728 = vmatprep.subr.bf16.mxu0 %v530
          %729 = vmatpush1.bf16.msra.mxu0 %v527
          %730 = vmatprep.subr.bf16.mxu0 0
          %731 = vmatpush2.bf16.msra.mxu0 0
          %732 = vmatprep.subr.bf16.mxu0 0
          %733 = vmatpush2.bf16.msra.mxu0 0
          %734 = vmatprep.subr.bf16.mxu0 0
          %735 = vmatpush2.bf16.msra.mxu0 0
          %736 = vmatprep.subr.bf16.mxu0 0
          %737 = vmatpush2.bf16.msra.mxu0 0
          %738 = vmatprep.subr.bf16.mxu0 0
          %739 = vmatpush2.bf16.msra.mxu0 0
          %740 = vmatprep.subr.bf16.mxu0 0
          %741 = vmatpush2.bf16.msra.mxu0 0
          %742 = vmatprep.subr.bf16.mxu0 0
          %743 = vmatpush2.bf16.msra.mxu0 0
          %744 = vmatprep.subr.bf16.mxu0 0
          %745 = vmatpush2.bf16.msra.mxu0 0
          %746 = vmatprep.mubr.bf16.mxu0 0
          %747 = vmatmul.mubr.bf16.gmra.mxu0 %v499
          %v748 = vpop.f32.mrf.mxu0
          %v749 = vadd.f32 %v412, %v748
          %v750 = vpop.f32.mrf.mxu0
          %v751 = vadd.f32 %v416, %v750
          %v752 = vpop.f32.mrf.mxu0
          %v753 = vpop.f32.mrf.mxu0
          %754 = vdwg.mxu0
          %755 = vmatprep.subr.bf16.mxu0 0
          %756 = vmatpush1.bf16.msra.mxu0 0
          %757 = vmatprep.subr.bf16.mxu0 0
          %758 = vmatpush1.bf16.msra.mxu0 0
          %759 = vmatprep.subr.bf16.mxu0 0
          %760 = vmatpush1.bf16.msra.mxu0 0
          %761 = vmatprep.subr.bf16.mxu0 0
          %762 = vmatpush1.bf16.msra.mxu0 0
          %763 = vmatprep.subr.bf16.mxu0 0
          %764 = vmatpush1.bf16.msra.mxu0 0
          %765 = vmatprep.subr.bf16.mxu0 0
          %766 = vmatpush1.bf16.msra.mxu0 0
          %767 = vmatprep.subr.bf16.mxu0 0
          %768 = vmatpush1.bf16.msra.mxu0 0
          %769 = vmatprep.subr.bf16.mxu0 %v536
          %770 = vmatpush1.bf16.msra.mxu0 %v533
          %771 = vmatprep.subr.bf16.mxu0 0
          %772 = vmatpush2.bf16.msra.mxu0 0
          %773 = vmatprep.subr.bf16.mxu0 0
          %774 = vmatpush2.bf16.msra.mxu0 0
          %775 = vmatprep.subr.bf16.mxu0 0
          %776 = vmatpush2.bf16.msra.mxu0 0
          %777 = vmatprep.subr.bf16.mxu0 0
          %778 = vmatpush2.bf16.msra.mxu0 0
          %779 = vmatprep.subr.bf16.mxu0 0
          %780 = vmatpush2.bf16.msra.mxu0 0
          %781 = vmatprep.subr.bf16.mxu0 0
          %782 = vmatpush2.bf16.msra.mxu0 0
          %783 = vmatprep.subr.bf16.mxu0 0
          %784 = vmatpush2.bf16.msra.mxu0 0
          %785 = vmatprep.subr.bf16.mxu0 0
          %786 = vmatpush2.bf16.msra.mxu0 0
          %787 = vmatprep.mubr.bf16.mxu0 0
          %788 = vmatmul.mubr.bf16.gmra.mxu0 %v499
          %v789 = vpop.f32.mrf.mxu0
          %v790 = vadd.f32 %v420, %v789
          %v791 = vpop.f32.mrf.mxu0
          %v792 = vadd.f32 %v424, %v791
          %v793 = vpop.f32.mrf.mxu0
          %v794 = vpop.f32.mrf.mxu0
          %795 = vdwg.mxu0
          %796 = vmatprep.subr.bf16.mxu0 0
          %797 = vmatpush1.bf16.msra.mxu0 0
          %798 = vmatprep.subr.bf16.mxu0 0
          %799 = vmatpush1.bf16.msra.mxu0 0
          %800 = vmatprep.subr.bf16.mxu0 0
          %801 = vmatpush1.bf16.msra.mxu0 0
          %802 = vmatprep.subr.bf16.mxu0 0
          %803 = vmatpush1.bf16.msra.mxu0 0
          %804 = vmatprep.subr.bf16.mxu0 0
          %805 = vmatpush1.bf16.msra.mxu0 0
          %806 = vmatprep.subr.bf16.mxu0 0
          %807 = vmatpush1.bf16.msra.mxu0 0
          %808 = vmatprep.subr.bf16.mxu0 0
          %809 = vmatpush1.bf16.msra.mxu0 0
          %810 = vmatprep.subr.bf16.mxu0 %v542
          %811 = vmatpush1.bf16.msra.mxu0 %v539
          %812 = vmatprep.subr.bf16.mxu0 0
          %813 = vmatpush2.bf16.msra.mxu0 0
          %814 = vmatprep.subr.bf16.mxu0 0
          %815 = vmatpush2.bf16.msra.mxu0 0
          %816 = vmatprep.subr.bf16.mxu0 0
          %817 = vmatpush2.bf16.msra.mxu0 0
          %818 = vmatprep.subr.bf16.mxu0 0
          %819 = vmatpush2.bf16.msra.mxu0 0
          %820 = vmatprep.subr.bf16.mxu0 0
          %821 = vmatpush2.bf16.msra.mxu0 0
          %822 = vmatprep.subr.bf16.mxu0 0
          %823 = vmatpush2.bf16.msra.mxu0 0
          %824 = vmatprep.subr.bf16.mxu0 0
          %825 = vmatpush2.bf16.msra.mxu0 0
          %826 = vmatprep.subr.bf16.mxu0 0
          %827 = vmatpush2.bf16.msra.mxu0 0
          %828 = vmatprep.mubr.bf16.mxu0 0
          %829 = vmatmul.mubr.bf16.gmra.mxu0 %v499
          %v830 = vpop.f32.mrf.mxu0
          %v831 = vadd.f32 %v428, %v830
          %v832 = vpop.f32.mrf.mxu0
          %v833 = vadd.f32 %v432, %v832
          %v834 = vpop.f32.mrf.mxu0
          %v835 = vpop.f32.mrf.mxu0
          %836 = vdwg.mxu0
          %837 = vmatprep.subr.bf16.mxu0 0
          %838 = vmatpush1.bf16.msra.mxu0 0
          %839 = vmatprep.subr.bf16.mxu0 0
          %840 = vmatpush1.bf16.msra.mxu0 0
          %841 = vmatprep.subr.bf16.mxu0 0
          %842 = vmatpush1.bf16.msra.mxu0 0
          %843 = vmatprep.subr.bf16.mxu0 0
          %844 = vmatpush1.bf16.msra.mxu0 0
          %845 = vmatprep.subr.bf16.mxu0 0
          %846 = vmatpush1.bf16.msra.mxu0 0
          %847 = vmatprep.subr.bf16.mxu0 0
          %848 = vmatpush1.bf16.msra.mxu0 0
          %849 = vmatprep.subr.bf16.mxu0 0
          %850 = vmatpush1.bf16.msra.mxu0 0
          %851 = vmatprep.subr.bf16.mxu0 %v548
          %852 = vmatpush1.bf16.msra.mxu0 %v545
          %853 = vmatprep.subr.bf16.mxu0 0
          %854 = vmatpush2.bf16.msra.mxu0 0
          %855 = vmatprep.subr.bf16.mxu0 0
          %856 = vmatpush2.bf16.msra.mxu0 0
          %857 = vmatprep.subr.bf16.mxu0 0
          %858 = vmatpush2.bf16.msra.mxu0 0
          %859 = vmatprep.subr.bf16.mxu0 0
          %860 = vmatpush2.bf16.msra.mxu0 0
          %861 = vmatprep.subr.bf16.mxu0 0
          %862 = vmatpush2.bf16.msra.mxu0 0
          %863 = vmatprep.subr.bf16.mxu0 0
          %864 = vmatpush2.bf16.msra.mxu0 0
          %865 = vmatprep.subr.bf16.mxu0 0
          %866 = vmatpush2.bf16.msra.mxu0 0
          %867 = vmatprep.subr.bf16.mxu0 0
          %868 = vmatpush2.bf16.msra.mxu0 0
          %869 = vmatprep.mubr.bf16.mxu0 0
          %870 = vmatmul.mubr.bf16.gmra.mxu0 %v499
          %v871 = vpop.f32.mrf.mxu0
          %v872 = vadd.f32 %v436, %v871
          %v873 = vpop.f32.mrf.mxu0
          %v874 = vadd.f32 %v440, %v873
          %v875 = vpop.f32.mrf.mxu0
          %v876 = vpop.f32.mrf.mxu0
          %877 = vdwg.mxu0
          %v878 = vpack.c.bf16 %v585, %v585
          %v879 = vpack.c.bf16 %v587, %v587
          %v880 = vpack.c.bf16 %v626, %v626
          %v881 = vpack.c.bf16 %v628, %v628
          %v882 = vpack.c.bf16 %v667, %v667
          %v883 = vpack.c.bf16 %v669, %v669
          %v884 = vpack.c.bf16 %v708, %v708
          %v885 = vpack.c.bf16 %v710, %v710
          %v886 = vpack.c.bf16 %v749, %v749
          %v887 = vpack.c.bf16 %v751, %v751
          %v888 = vpack.c.bf16 %v790, %v790
          %v889 = vpack.c.bf16 %v792, %v792
          %v890 = vpack.c.bf16 %v831, %v831
          %v891 = vpack.c.bf16 %v833, %v833
          %v892 = vpack.c.bf16 %v872, %v872
          %v893 = vpack.c.bf16 %v874, %v874
          %v894 = vld [vmem:[#allocation9] sm:$0xf]
          %v895 = vld [vmem:[#allocation9 + $0x4] sm:$0xf]
          %v896 = vld [vmem:[#allocation9 + $0x8] sm:$0xf]
          %v897 = vld [vmem:[#allocation9 + $0xc] sm:$0xf]
          %v898 = vld [vmem:[#allocation9 + $0x10] sm:$0xf]
          %v899 = vld [vmem:[#allocation9 + $0x14] sm:$0xf]
          %v900 = vld [vmem:[#allocation9 + $0x18] sm:$0xf]
          %v901 = vld [vmem:[#allocation9 + $0x1c] sm:$0xf]
          %v902 = vld [vmem:[#allocation9 + $0x20] sm:$0xf]
          %v903 = vld [vmem:[#allocation9 + $0x24] sm:$0xf]
          %v904 = vld [vmem:[#allocation9 + $0x28] sm:$0xf]
          %v905 = vld [vmem:[#allocation9 + $0x2c] sm:$0xf]
          %v906 = vld [vmem:[#allocation9 + $0x30] sm:$0xf]
          %v907 = vld [vmem:[#allocation9 + $0x34] sm:$0xf]
          %v908 = vld [vmem:[#allocation9 + $0x38] sm:$0xf]
          %v909 = vld [vmem:[#allocation9 + $0x3c] sm:$0xf]
          %v910 = vld [vmem:[#allocation9 + $0x40] sm:$0xf]
          %v911 = vld [vmem:[#allocation9 + $0x44] sm:$0xf]
          %v912 = vld [vmem:[#allocation9 + $0x48] sm:$0xf]
          %v913 = vld [vmem:[#allocation9 + $0x4c] sm:$0xf]
          %v914 = vld [vmem:[#allocation9 + $0x50] sm:$0xf]
          %v915 = vld [vmem:[#allocation9 + $0x54] sm:$0xf]
          %v916 = vld [vmem:[#allocation9 + $0x58] sm:$0xf]
          %v917 = vld [vmem:[#allocation9 + $0x5c] sm:$0xf]
          %v918 = vld [vmem:[#allocation9 + $0x60] sm:$0xf]
          %v919 = vld [vmem:[#allocation9 + $0x64] sm:$0xf]
          %v920 = vld [vmem:[#allocation9 + $0x68] sm:$0xf]
          %v921 = vld [vmem:[#allocation9 + $0x6c] sm:$0xf]
          %v922 = vld [vmem:[#allocation9 + $0x70] sm:$0xf]
          %v923 = vld [vmem:[#allocation9 + $0x74] sm:$0xf]
          %v924 = vld [vmem:[#allocation9 + $0x78] sm:$0xf]
          %v925 = vld [vmem:[#allocation9 + $0x7c] sm:$0xf]
          %v926 = vld [vmem:[#allocation9 + $0x80] sm:$0xf]
          %v927 = vld [vmem:[#allocation9 + $0x84] sm:$0xf]
          %v928 = vld [vmem:[#allocation9 + $0x88] sm:$0xf]
          %v929 = vld [vmem:[#allocation9 + $0x8c] sm:$0xf]
          %v930 = vld [vmem:[#allocation9 + $0x90] sm:$0xf]
          %v931 = vld [vmem:[#allocation9 + $0x94] sm:$0xf]
          %v932 = vld [vmem:[#allocation9 + $0x98] sm:$0xf]
          %v933 = vld [vmem:[#allocation9 + $0x9c] sm:$0xf]
          %v934 = vld [vmem:[#allocation9 + $0xa0] sm:$0xf]
          %v935 = vld [vmem:[#allocation9 + $0xa4] sm:$0xf]
          %v936 = vld [vmem:[#allocation9 + $0xa8] sm:$0xf]
          %v937 = vld [vmem:[#allocation9 + $0xac] sm:$0xf]
          %v938 = vld [vmem:[#allocation9 + $0xb0] sm:$0xf]
          %v939 = vld [vmem:[#allocation9 + $0xb4] sm:$0xf]
          %v940 = vld [vmem:[#allocation9 + $0xb8] sm:$0xf]
          %v941 = vld [vmem:[#allocation9 + $0xbc] sm:$0xf]
          %v942 = vld [vmem:[#allocation9 + $0xc0] sm:$0xf]
          %v943 = vld [vmem:[#allocation9 + $0xc4] sm:$0xf]
          %v944 = vld [vmem:[#allocation9 + $0xc8] sm:$0xf]
          %v945 = vld [vmem:[#allocation9 + $0xcc] sm:$0xf]
          %v946 = vld [vmem:[#allocation9 + $0xd0] sm:$0xf]
          %v947 = vld [vmem:[#allocation9 + $0xd4] sm:$0xf]
          %v948 = vld [vmem:[#allocation9 + $0xd8] sm:$0xf]
          %v949 = vld [vmem:[#allocation9 + $0xdc] sm:$0xf]
          %v950 = vld [vmem:[#allocation9 + $0xe0] sm:$0xf]
          %v951 = vld [vmem:[#allocation9 + $0xe4] sm:$0xf]
          %v952 = vld [vmem:[#allocation9 + $0xe8] sm:$0xf]
          %v953 = vld [vmem:[#allocation9 + $0xec] sm:$0xf]
          %v954 = vld [vmem:[#allocation9 + $0xf0] sm:$0xf]
          %v955 = vld [vmem:[#allocation9 + $0xf4] sm:$0xf]
          %v956 = vld [vmem:[#allocation9 + $0xf8] sm:$0xf]
          %v957 = vld [vmem:[#allocation9 + $0xfc] sm:$0xf]
          %v958 = vld [vmem:[#allocation9 + $0x100] sm:$0xf]
          %v959 = vld [vmem:[#allocation9 + $0x104] sm:$0xf]
          %v960 = vld [vmem:[#allocation9 + $0x108] sm:$0xf]
          %v961 = vld [vmem:[#allocation9 + $0x10c] sm:$0xf]
          %v962 = vld [vmem:[#allocation9 + $0x110] sm:$0xf]
          %v963 = vld [vmem:[#allocation9 + $0x114] sm:$0xf]
          %v964 = vld [vmem:[#allocation9 + $0x118] sm:$0xf]
          %v965 = vld [vmem:[#allocation9 + $0x11c] sm:$0xf]
          %v966 = vld [vmem:[#allocation9 + $0x120] sm:$0xf]
          %v967 = vld [vmem:[#allocation9 + $0x124] sm:$0xf]
          %v968 = vld [vmem:[#allocation9 + $0x128] sm:$0xf]
          %v969 = vld [vmem:[#allocation9 + $0x12c] sm:$0xf]
          %v970 = vld [vmem:[#allocation9 + $0x130] sm:$0xf]
          %v971 = vld [vmem:[#allocation9 + $0x134] sm:$0xf]
          %v972 = vld [vmem:[#allocation9 + $0x138] sm:$0xf]
          %v973 = vld [vmem:[#allocation9 + $0x13c] sm:$0xf]
          %v974 = vld [vmem:[#allocation9 + $0x140] sm:$0xf]
          %v975 = vld [vmem:[#allocation9 + $0x144] sm:$0xf]
          %v976 = vld [vmem:[#allocation9 + $0x148] sm:$0xf]
          %v977 = vld [vmem:[#allocation9 + $0x14c] sm:$0xf]
          %v978 = vld [vmem:[#allocation9 + $0x150] sm:$0xf]
          %v979 = vld [vmem:[#allocation9 + $0x154] sm:$0xf]
          %v980 = vld [vmem:[#allocation9 + $0x158] sm:$0xf]
          %v981 = vld [vmem:[#allocation9 + $0x15c] sm:$0xf]
          %v982 = vld [vmem:[#allocation9 + $0x160] sm:$0xf]
          %v983 = vld [vmem:[#allocation9 + $0x164] sm:$0xf]
          %v984 = vld [vmem:[#allocation9 + $0x168] sm:$0xf]
          %v985 = vld [vmem:[#allocation9 + $0x16c] sm:$0xf]
          %v986 = vld [vmem:[#allocation9 + $0x170] sm:$0xf]
          %v987 = vld [vmem:[#allocation9 + $0x174] sm:$0xf]
          %v988 = vld [vmem:[#allocation9 + $0x178] sm:$0xf]
          %v989 = vld [vmem:[#allocation9 + $0x17c] sm:$0xf]
          %v990 = vld [vmem:[#allocation9 + $0x180] sm:$0xf]
          %v991 = vld [vmem:[#allocation9 + $0x184] sm:$0xf]
          %v992 = vld [vmem:[#allocation9 + $0x188] sm:$0xf]
          %v993 = vld [vmem:[#allocation9 + $0x18c] sm:$0xf]
          %v994 = vld [vmem:[#allocation9 + $0x190] sm:$0xf]
          %v995 = vld [vmem:[#allocation9 + $0x194] sm:$0xf]
          %v996 = vld [vmem:[#allocation9 + $0x198] sm:$0xf]
          %v997 = vld [vmem:[#allocation9 + $0x19c] sm:$0xf]
          %v998 = vld [vmem:[#allocation9 + $0x1a0] sm:$0xf]
          %v999 = vld [vmem:[#allocation9 + $0x1a4] sm:$0xf]
          %v1000 = vld [vmem:[#allocation9 + $0x1a8] sm:$0xf]
          %v1001 = vld [vmem:[#allocation9 + $0x1ac] sm:$0xf]
          %v1002 = vld [vmem:[#allocation9 + $0x1b0] sm:$0xf]
          %v1003 = vld [vmem:[#allocation9 + $0x1b4] sm:$0xf]
          %v1004 = vld [vmem:[#allocation9 + $0x1b8] sm:$0xf]
          %v1005 = vld [vmem:[#allocation9 + $0x1bc] sm:$0xf]
          %v1006 = vld [vmem:[#allocation9 + $0x1c0] sm:$0xf]
          %v1007 = vld [vmem:[#allocation9 + $0x1c4] sm:$0xf]
          %v1008 = vld [vmem:[#allocation9 + $0x1c8] sm:$0xf]
          %v1009 = vld [vmem:[#allocation9 + $0x1cc] sm:$0xf]
          %v1010 = vld [vmem:[#allocation9 + $0x1d0] sm:$0xf]
          %v1011 = vld [vmem:[#allocation9 + $0x1d4] sm:$0xf]
          %v1012 = vld [vmem:[#allocation9 + $0x1d8] sm:$0xf]
          %v1013 = vld [vmem:[#allocation9 + $0x1dc] sm:$0xf]
          %v1014 = vld [vmem:[#allocation9 + $0x1e0] sm:$0xf]
          %v1015 = vld [vmem:[#allocation9 + $0x1e4] sm:$0xf]
          %v1016 = vld [vmem:[#allocation9 + $0x1e8] sm:$0xf]
          %v1017 = vld [vmem:[#allocation9 + $0x1ec] sm:$0xf]
          %v1018 = vld [vmem:[#allocation9 + $0x1f0] sm:$0xf]
          %v1019 = vld [vmem:[#allocation9 + $0x1f4] sm:$0xf]
          %v1020 = vld [vmem:[#allocation9 + $0x1f8] sm:$0xf]
          %v1021 = vld [vmem:[#allocation9 + $0x1fc] sm:$0xf]
          %v1022 = vld [vmem:[#allocation9 + $0x200] sm:$0xf]
          %v1023 = vld [vmem:[#allocation9 + $0x204] sm:$0xf]
          %v1024 = vld [vmem:[#allocation9 + $0x208] sm:$0xf]
          %v1025 = vld [vmem:[#allocation9 + $0x20c] sm:$0xf]
          %v1026 = vld [vmem:[#allocation9 + $0x210] sm:$0xf]
          %v1027 = vld [vmem:[#allocation9 + $0x214] sm:$0xf]
          %v1028 = vld [vmem:[#allocation9 + $0x218] sm:$0xf]
          %v1029 = vld [vmem:[#allocation9 + $0x21c] sm:$0xf]
          %v1030 = vld [vmem:[#allocation9 + $0x220] sm:$0xf]
          %v1031 = vld [vmem:[#allocation9 + $0x224] sm:$0xf]
          %v1032 = vld [vmem:[#allocation9 + $0x228] sm:$0xf]
          %v1033 = vld [vmem:[#allocation9 + $0x22c] sm:$0xf]
          %v1034 = vld [vmem:[#allocation9 + $0x230] sm:$0xf]
          %v1035 = vld [vmem:[#allocation9 + $0x234] sm:$0xf]
          %v1036 = vld [vmem:[#allocation9 + $0x238] sm:$0xf]
          %v1037 = vld [vmem:[#allocation9 + $0x23c] sm:$0xf]
          %v1038 = vld [vmem:[#allocation9 + $0x240] sm:$0xf]
          %v1039 = vld [vmem:[#allocation9 + $0x244] sm:$0xf]
          %v1040 = vld [vmem:[#allocation9 + $0x248] sm:$0xf]
          %v1041 = vld [vmem:[#allocation9 + $0x24c] sm:$0xf]
          %v1042 = vld [vmem:[#allocation9 + $0x250] sm:$0xf]
          %v1043 = vld [vmem:[#allocation9 + $0x254] sm:$0xf]
          %v1044 = vld [vmem:[#allocation9 + $0x258] sm:$0xf]
          %v1045 = vld [vmem:[#allocation9 + $0x25c] sm:$0xf]
          %v1046 = vld [vmem:[#allocation9 + $0x260] sm:$0xf]
          %v1047 = vld [vmem:[#allocation9 + $0x264] sm:$0xf]
          %v1048 = vld [vmem:[#allocation9 + $0x268] sm:$0xf]
          %v1049 = vld [vmem:[#allocation9 + $0x26c] sm:$0xf]
          %v1050 = vld [vmem:[#allocation9 + $0x270] sm:$0xf]
          %v1051 = vld [vmem:[#allocation9 + $0x274] sm:$0xf]
          %v1052 = vld [vmem:[#allocation9 + $0x278] sm:$0xf]
          %v1053 = vld [vmem:[#allocation9 + $0x27c] sm:$0xf]
          %v1054 = vld [vmem:[#allocation9 + $0x280] sm:$0xf]
          %v1055 = vld [vmem:[#allocation9 + $0x284] sm:$0xf]
          %v1056 = vld [vmem:[#allocation9 + $0x288] sm:$0xf]
          %v1057 = vld [vmem:[#allocation9 + $0x28c] sm:$0xf]
          %v1058 = vld [vmem:[#allocation9 + $0x290] sm:$0xf]
          %v1059 = vld [vmem:[#allocation9 + $0x294] sm:$0xf]
          %v1060 = vld [vmem:[#allocation9 + $0x298] sm:$0xf]
          %v1061 = vld [vmem:[#allocation9 + $0x29c] sm:$0xf]
          %v1062 = vld [vmem:[#allocation9 + $0x2a0] sm:$0xf]
          %v1063 = vld [vmem:[#allocation9 + $0x2a4] sm:$0xf]
          %v1064 = vld [vmem:[#allocation9 + $0x2a8] sm:$0xf]
          %v1065 = vld [vmem:[#allocation9 + $0x2ac] sm:$0xf]
          %v1066 = vld [vmem:[#allocation9 + $0x2b0] sm:$0xf]
          %v1067 = vld [vmem:[#allocation9 + $0x2b4] sm:$0xf]
          %v1068 = vld [vmem:[#allocation9 + $0x2b8] sm:$0xf]
          %v1069 = vld [vmem:[#allocation9 + $0x2bc] sm:$0xf]
          %v1070 = vld [vmem:[#allocation9 + $0x2c0] sm:$0xf]
          %v1071 = vld [vmem:[#allocation9 + $0x2c4] sm:$0xf]
          %v1072 = vld [vmem:[#allocation9 + $0x2c8] sm:$0xf]
          %v1073 = vld [vmem:[#allocation9 + $0x2cc] sm:$0xf]
          %v1074 = vld [vmem:[#allocation9 + $0x2d0] sm:$0xf]
          %v1075 = vld [vmem:[#allocation9 + $0x2d4] sm:$0xf]
          %v1076 = vld [vmem:[#allocation9 + $0x2d8] sm:$0xf]
          %v1077 = vld [vmem:[#allocation9 + $0x2dc] sm:$0xf]
          %v1078 = vld [vmem:[#allocation9 + $0x2e0] sm:$0xf]
          %v1079 = vld [vmem:[#allocation9 + $0x2e4] sm:$0xf]
          %v1080 = vld [vmem:[#allocation9 + $0x2e8] sm:$0xf]
          %v1081 = vld [vmem:[#allocation9 + $0x2ec] sm:$0xf]
          %v1082 = vld [vmem:[#allocation9 + $0x2f0] sm:$0xf]
          %v1083 = vld [vmem:[#allocation9 + $0x2f4] sm:$0xf]
          %v1084 = vld [vmem:[#allocation9 + $0x2f8] sm:$0xf]
          %v1085 = vld [vmem:[#allocation9 + $0x2fc] sm:$0xf]
          %v1086 = vld [vmem:[#allocation9 + $0x300] sm:$0xf]
          %v1087 = vld [vmem:[#allocation9 + $0x304] sm:$0xf]
          %v1088 = vld [vmem:[#allocation9 + $0x308] sm:$0xf]
          %v1089 = vld [vmem:[#allocation9 + $0x30c] sm:$0xf]
          %v1090 = vld [vmem:[#allocation9 + $0x310] sm:$0xf]
          %v1091 = vld [vmem:[#allocation9 + $0x314] sm:$0xf]
          %v1092 = vld [vmem:[#allocation9 + $0x318] sm:$0xf]
          %v1093 = vld [vmem:[#allocation9 + $0x31c] sm:$0xf]
          %v1094 = vld [vmem:[#allocation9 + $0x320] sm:$0xf]
          %v1095 = vld [vmem:[#allocation9 + $0x324] sm:$0xf]
          %v1096 = vld [vmem:[#allocation9 + $0x328] sm:$0xf]
          %v1097 = vld [vmem:[#allocation9 + $0x32c] sm:$0xf]
          %v1098 = vld [vmem:[#allocation9 + $0x330] sm:$0xf]
          %v1099 = vld [vmem:[#allocation9 + $0x334] sm:$0xf]
          %v1100 = vld [vmem:[#allocation9 + $0x338] sm:$0xf]
          %v1101 = vld [vmem:[#allocation9 + $0x33c] sm:$0xf]
          %v1102 = vld [vmem:[#allocation9 + $0x340] sm:$0xf]
          %v1103 = vld [vmem:[#allocation9 + $0x344] sm:$0xf]
          %v1104 = vld [vmem:[#allocation9 + $0x348] sm:$0xf]
          %v1105 = vld [vmem:[#allocation9 + $0x34c] sm:$0xf]
          %v1106 = vld [vmem:[#allocation9 + $0x350] sm:$0xf]
          %v1107 = vld [vmem:[#allocation9 + $0x354] sm:$0xf]
          %v1108 = vld [vmem:[#allocation9 + $0x358] sm:$0xf]
          %v1109 = vld [vmem:[#allocation9 + $0x35c] sm:$0xf]
          %v1110 = vld [vmem:[#allocation9 + $0x360] sm:$0xf]
          %v1111 = vld [vmem:[#allocation9 + $0x364] sm:$0xf]
          %v1112 = vld [vmem:[#allocation9 + $0x368] sm:$0xf]
          %v1113 = vld [vmem:[#allocation9 + $0x36c] sm:$0xf]
          %v1114 = vld [vmem:[#allocation9 + $0x370] sm:$0xf]
          %v1115 = vld [vmem:[#allocation9 + $0x374] sm:$0xf]
          %v1116 = vld [vmem:[#allocation9 + $0x378] sm:$0xf]
          %v1117 = vld [vmem:[#allocation9 + $0x37c] sm:$0xf]
          %v1118 = vld [vmem:[#allocation9 + $0x380] sm:$0xf]
          %v1119 = vld [vmem:[#allocation9 + $0x384] sm:$0xf]
          %v1120 = vld [vmem:[#allocation9 + $0x388] sm:$0xf]
          %v1121 = vld [vmem:[#allocation9 + $0x38c] sm:$0xf]
          %v1122 = vld [vmem:[#allocation9 + $0x390] sm:$0xf]
          %v1123 = vld [vmem:[#allocation9 + $0x394] sm:$0xf]
          %v1124 = vld [vmem:[#allocation9 + $0x398] sm:$0xf]
          %v1125 = vld [vmem:[#allocation9 + $0x39c] sm:$0xf]
          %v1126 = vld [vmem:[#allocation9 + $0x3a0] sm:$0xf]
          %v1127 = vld [vmem:[#allocation9 + $0x3a4] sm:$0xf]
          %v1128 = vld [vmem:[#allocation9 + $0x3a8] sm:$0xf]
          %v1129 = vld [vmem:[#allocation9 + $0x3ac] sm:$0xf]
          %v1130 = vld [vmem:[#allocation9 + $0x3b0] sm:$0xf]
          %v1131 = vld [vmem:[#allocation9 + $0x3b4] sm:$0xf]
          %v1132 = vld [vmem:[#allocation9 + $0x3b8] sm:$0xf]
          %v1133 = vld [vmem:[#allocation9 + $0x3bc] sm:$0xf]
          %v1134 = vld [vmem:[#allocation9 + $0x3c0] sm:$0xf]
          %v1135 = vld [vmem:[#allocation9 + $0x3c4] sm:$0xf]
          %v1136 = vld [vmem:[#allocation9 + $0x3c8] sm:$0xf]
          %v1137 = vld [vmem:[#allocation9 + $0x3cc] sm:$0xf]
          %v1138 = vld [vmem:[#allocation9 + $0x3d0] sm:$0xf]
          %v1139 = vld [vmem:[#allocation9 + $0x3d4] sm:$0xf]
          %v1140 = vld [vmem:[#allocation9 + $0x3d8] sm:$0xf]
          %v1141 = vld [vmem:[#allocation9 + $0x3dc] sm:$0xf]
          %v1142 = vld [vmem:[#allocation9 + $0x3e0] sm:$0xf]
          %v1143 = vld [vmem:[#allocation9 + $0x3e4] sm:$0xf]
          %v1144 = vld [vmem:[#allocation9 + $0x3e8] sm:$0xf]
          %v1145 = vld [vmem:[#allocation9 + $0x3ec] sm:$0xf]
          %v1146 = vld [vmem:[#allocation9 + $0x3f0] sm:$0xf]
          %v1147 = vld [vmem:[#allocation9 + $0x3f4] sm:$0xf]
          %v1148 = vld [vmem:[#allocation9 + $0x3f8] sm:$0xf]
          %v1149 = vld [vmem:[#allocation9 + $0x3fc] sm:$0xf]
          %v1150 = vld [vmem:[%s4] sm:$0x1]
          %v1152 = vlaneseq
          %v1153 = vshrl.u32 %v1152, 7
          %v1154 = vsub.s32 0, %v1153
          %v1155 = vrot.slane %v1150, %v1154
          %v1413 = vunpack.c.l.b16 %v894
          %v1414 = vunpack.c.l.b16 %v895
          %v1415 = vunpack.c.l.b16 %v896
          %v1416 = vunpack.c.l.b16 %v897
          %v1417 = vunpack.c.l.b16 %v898
          %v1418 = vunpack.c.l.b16 %v899
          %v1419 = vunpack.c.l.b16 %v900
          %v1420 = vunpack.c.l.b16 %v901
          %v1421 = vunpack.c.l.b16 %v902
          %v1422 = vunpack.c.l.b16 %v903
          %v1423 = vunpack.c.l.b16 %v904
          %v1424 = vunpack.c.l.b16 %v905
          %v1425 = vunpack.c.l.b16 %v906
          %v1426 = vunpack.c.l.b16 %v907
          %v1427 = vunpack.c.l.b16 %v908
          %v1428 = vunpack.c.l.b16 %v909
          %v1429 = vunpack.c.l.b16 %v910
          %v1430 = vunpack.c.l.b16 %v911
          %v1431 = vunpack.c.l.b16 %v912
          %v1432 = vunpack.c.l.b16 %v913
          %v1433 = vunpack.c.l.b16 %v914
          %v1434 = vunpack.c.l.b16 %v915
          %v1435 = vunpack.c.l.b16 %v916
          %v1436 = vunpack.c.l.b16 %v917
          %v1437 = vunpack.c.l.b16 %v918
          %v1438 = vunpack.c.l.b16 %v919
          %v1439 = vunpack.c.l.b16 %v920
          %v1440 = vunpack.c.l.b16 %v921
          %v1441 = vunpack.c.l.b16 %v922
          %v1442 = vunpack.c.l.b16 %v923
          %v1443 = vunpack.c.l.b16 %v924
          %v1444 = vunpack.c.l.b16 %v925
          %v1445 = vunpack.c.l.b16 %v926
          %v1446 = vunpack.c.l.b16 %v927
          %v1447 = vunpack.c.l.b16 %v928
          %v1448 = vunpack.c.l.b16 %v929
          %v1449 = vunpack.c.l.b16 %v930
          %v1450 = vunpack.c.l.b16 %v931
          %v1451 = vunpack.c.l.b16 %v932
          %v1452 = vunpack.c.l.b16 %v933
          %v1453 = vunpack.c.l.b16 %v934
          %v1454 = vunpack.c.l.b16 %v935
          %v1455 = vunpack.c.l.b16 %v936
          %v1456 = vunpack.c.l.b16 %v937
          %v1457 = vunpack.c.l.b16 %v938
          %v1458 = vunpack.c.l.b16 %v939
          %v1459 = vunpack.c.l.b16 %v940
          %v1460 = vunpack.c.l.b16 %v941
          %v1461 = vunpack.c.l.b16 %v942
          %v1462 = vunpack.c.l.b16 %v943
          %v1463 = vunpack.c.l.b16 %v944
          %v1464 = vunpack.c.l.b16 %v945
          %v1465 = vunpack.c.l.b16 %v946
          %v1466 = vunpack.c.l.b16 %v947
          %v1467 = vunpack.c.l.b16 %v948
          %v1468 = vunpack.c.l.b16 %v949
          %v1469 = vunpack.c.l.b16 %v950
          %v1470 = vunpack.c.l.b16 %v951
          %v1471 = vunpack.c.l.b16 %v952
          %v1472 = vunpack.c.l.b16 %v953
          %v1473 = vunpack.c.l.b16 %v954
          %v1474 = vunpack.c.l.b16 %v955
          %v1475 = vunpack.c.l.b16 %v956
          %v1476 = vunpack.c.l.b16 %v957
          %v1477 = vunpack.c.l.b16 %v958
          %v1478 = vunpack.c.l.b16 %v959
          %v1479 = vunpack.c.l.b16 %v960
          %v1480 = vunpack.c.l.b16 %v961
          %v1481 = vunpack.c.l.b16 %v962
          %v1482 = vunpack.c.l.b16 %v963
          %v1483 = vunpack.c.l.b16 %v964
          %v1484 = vunpack.c.l.b16 %v965
          %v1485 = vunpack.c.l.b16 %v966
          %v1486 = vunpack.c.l.b16 %v967
          %v1487 = vunpack.c.l.b16 %v968
          %v1488 = vunpack.c.l.b16 %v969
          %v1489 = vunpack.c.l.b16 %v970
          %v1490 = vunpack.c.l.b16 %v971
          %v1491 = vunpack.c.l.b16 %v972
          %v1492 = vunpack.c.l.b16 %v973
          %v1493 = vunpack.c.l.b16 %v974
          %v1494 = vunpack.c.l.b16 %v975
          %v1495 = vunpack.c.l.b16 %v976
          %v1496 = vunpack.c.l.b16 %v977
          %v1497 = vunpack.c.l.b16 %v978
          %v1498 = vunpack.c.l.b16 %v979
          %v1499 = vunpack.c.l.b16 %v980
          %v1500 = vunpack.c.l.b16 %v981
          %v1501 = vunpack.c.l.b16 %v982
          %v1502 = vunpack.c.l.b16 %v983
          %v1503 = vunpack.c.l.b16 %v984
          %v1504 = vunpack.c.l.b16 %v985
          %v1505 = vunpack.c.l.b16 %v986
          %v1506 = vunpack.c.l.b16 %v987
          %v1507 = vunpack.c.l.b16 %v988
          %v1508 = vunpack.c.l.b16 %v989
          %v1509 = vunpack.c.l.b16 %v990
          %v1510 = vunpack.c.l.b16 %v991
          %v1511 = vunpack.c.l.b16 %v992
          %v1512 = vunpack.c.l.b16 %v993
          %v1513 = vunpack.c.l.b16 %v994
          %v1514 = vunpack.c.l.b16 %v995
          %v1515 = vunpack.c.l.b16 %v996
          %v1516 = vunpack.c.l.b16 %v997
          %v1517 = vunpack.c.l.b16 %v998
          %v1518 = vunpack.c.l.b16 %v999
          %v1519 = vunpack.c.l.b16 %v1000
          %v1520 = vunpack.c.l.b16 %v1001
          %v1521 = vunpack.c.l.b16 %v1002
          %v1522 = vunpack.c.l.b16 %v1003
          %v1523 = vunpack.c.l.b16 %v1004
          %v1524 = vunpack.c.l.b16 %v1005
          %v1525 = vunpack.c.l.b16 %v1006
          %v1526 = vunpack.c.l.b16 %v1007
          %v1527 = vunpack.c.l.b16 %v1008
          %v1528 = vunpack.c.l.b16 %v1009
          %v1529 = vunpack.c.l.b16 %v1010
          %v1530 = vunpack.c.l.b16 %v1011
          %v1531 = vunpack.c.l.b16 %v1012
          %v1532 = vunpack.c.l.b16 %v1013
          %v1533 = vunpack.c.l.b16 %v1014
          %v1534 = vunpack.c.l.b16 %v1015
          %v1535 = vunpack.c.l.b16 %v1016
          %v1536 = vunpack.c.l.b16 %v1017
          %v1537 = vunpack.c.l.b16 %v1018
          %v1538 = vunpack.c.l.b16 %v1019
          %v1539 = vunpack.c.l.b16 %v1020
          %v1540 = vunpack.c.l.b16 %v1021
          %v1541 = vunpack.c.l.b16 %v1022
          %v1542 = vunpack.c.l.b16 %v1023
          %v1543 = vunpack.c.l.b16 %v1024
          %v1544 = vunpack.c.l.b16 %v1025
          %v1545 = vunpack.c.l.b16 %v1026
          %v1546 = vunpack.c.l.b16 %v1027
          %v1547 = vunpack.c.l.b16 %v1028
          %v1548 = vunpack.c.l.b16 %v1029
          %v1549 = vunpack.c.l.b16 %v1030
          %v1550 = vunpack.c.l.b16 %v1031
          %v1551 = vunpack.c.l.b16 %v1032
          %v1552 = vunpack.c.l.b16 %v1033
          %v1553 = vunpack.c.l.b16 %v1034
          %v1554 = vunpack.c.l.b16 %v1035
          %v1555 = vunpack.c.l.b16 %v1036
          %v1556 = vunpack.c.l.b16 %v1037
          %v1557 = vunpack.c.l.b16 %v1038
          %v1558 = vunpack.c.l.b16 %v1039
          %v1559 = vunpack.c.l.b16 %v1040
          %v1560 = vunpack.c.l.b16 %v1041
          %v1561 = vunpack.c.l.b16 %v1042
          %v1562 = vunpack.c.l.b16 %v1043
          %v1563 = vunpack.c.l.b16 %v1044
          %v1564 = vunpack.c.l.b16 %v1045
          %v1565 = vunpack.c.l.b16 %v1046
          %v1566 = vunpack.c.l.b16 %v1047
          %v1567 = vunpack.c.l.b16 %v1048
          %v1568 = vunpack.c.l.b16 %v1049
          %v1569 = vunpack.c.l.b16 %v1050
          %v1570 = vunpack.c.l.b16 %v1051
          %v1571 = vunpack.c.l.b16 %v1052
          %v1572 = vunpack.c.l.b16 %v1053
          %v1573 = vunpack.c.l.b16 %v1054
          %v1574 = vunpack.c.l.b16 %v1055
          %v1575 = vunpack.c.l.b16 %v1056
          %v1576 = vunpack.c.l.b16 %v1057
          %v1577 = vunpack.c.l.b16 %v1058
          %v1578 = vunpack.c.l.b16 %v1059
          %v1579 = vunpack.c.l.b16 %v1060
          %v1580 = vunpack.c.l.b16 %v1061
          %v1581 = vunpack.c.l.b16 %v1062
          %v1582 = vunpack.c.l.b16 %v1063
          %v1583 = vunpack.c.l.b16 %v1064
          %v1584 = vunpack.c.l.b16 %v1065
          %v1585 = vunpack.c.l.b16 %v1066
          %v1586 = vunpack.c.l.b16 %v1067
          %v1587 = vunpack.c.l.b16 %v1068
          %v1588 = vunpack.c.l.b16 %v1069
          %v1589 = vunpack.c.l.b16 %v1070
          %v1590 = vunpack.c.l.b16 %v1071
          %v1591 = vunpack.c.l.b16 %v1072
          %v1592 = vunpack.c.l.b16 %v1073
          %v1593 = vunpack.c.l.b16 %v1074
          %v1594 = vunpack.c.l.b16 %v1075
          %v1595 = vunpack.c.l.b16 %v1076
          %v1596 = vunpack.c.l.b16 %v1077
          %v1597 = vunpack.c.l.b16 %v1078
          %v1598 = vunpack.c.l.b16 %v1079
          %v1599 = vunpack.c.l.b16 %v1080
          %v1600 = vunpack.c.l.b16 %v1081
          %v1601 = vunpack.c.l.b16 %v1082
          %v1602 = vunpack.c.l.b16 %v1083
          %v1603 = vunpack.c.l.b16 %v1084
          %v1604 = vunpack.c.l.b16 %v1085
          %v1605 = vunpack.c.l.b16 %v1086
          %v1606 = vunpack.c.l.b16 %v1087
          %v1607 = vunpack.c.l.b16 %v1088
          %v1608 = vunpack.c.l.b16 %v1089
          %v1609 = vunpack.c.l.b16 %v1090
          %v1610 = vunpack.c.l.b16 %v1091
          %v1611 = vunpack.c.l.b16 %v1092
          %v1612 = vunpack.c.l.b16 %v1093
          %v1613 = vunpack.c.l.b16 %v1094
          %v1614 = vunpack.c.l.b16 %v1095
          %v1615 = vunpack.c.l.b16 %v1096
          %v1616 = vunpack.c.l.b16 %v1097
          %v1617 = vunpack.c.l.b16 %v1098
          %v1618 = vunpack.c.l.b16 %v1099
          %v1619 = vunpack.c.l.b16 %v1100
          %v1620 = vunpack.c.l.b16 %v1101
          %v1621 = vunpack.c.l.b16 %v1102
          %v1622 = vunpack.c.l.b16 %v1103
          %v1623 = vunpack.c.l.b16 %v1104
          %v1624 = vunpack.c.l.b16 %v1105
          %v1625 = vunpack.c.l.b16 %v1106
          %v1626 = vunpack.c.l.b16 %v1107
          %v1627 = vunpack.c.l.b16 %v1108
          %v1628 = vunpack.c.l.b16 %v1109
          %v1629 = vunpack.c.l.b16 %v1110
          %v1630 = vunpack.c.l.b16 %v1111
          %v1631 = vunpack.c.l.b16 %v1112
          %v1632 = vunpack.c.l.b16 %v1113
          %v1633 = vunpack.c.l.b16 %v1114
          %v1634 = vunpack.c.l.b16 %v1115
          %v1635 = vunpack.c.l.b16 %v1116
          %v1636 = vunpack.c.l.b16 %v1117
          %v1637 = vunpack.c.l.b16 %v1118
          %v1638 = vunpack.c.l.b16 %v1119
          %v1639 = vunpack.c.l.b16 %v1120
          %v1640 = vunpack.c.l.b16 %v1121
          %v1641 = vunpack.c.l.b16 %v1122
          %v1642 = vunpack.c.l.b16 %v1123
          %v1643 = vunpack.c.l.b16 %v1124
          %v1644 = vunpack.c.l.b16 %v1125
          %v1645 = vunpack.c.l.b16 %v1126
          %v1646 = vunpack.c.l.b16 %v1127
          %v1647 = vunpack.c.l.b16 %v1128
          %v1648 = vunpack.c.l.b16 %v1129
          %v1649 = vunpack.c.l.b16 %v1130
          %v1650 = vunpack.c.l.b16 %v1131
          %v1651 = vunpack.c.l.b16 %v1132
          %v1652 = vunpack.c.l.b16 %v1133
          %v1653 = vunpack.c.l.b16 %v1134
          %v1654 = vunpack.c.l.b16 %v1135
          %v1655 = vunpack.c.l.b16 %v1136
          %v1656 = vunpack.c.l.b16 %v1137
          %v1657 = vunpack.c.l.b16 %v1138
          %v1658 = vunpack.c.l.b16 %v1139
          %v1659 = vunpack.c.l.b16 %v1140
          %v1660 = vunpack.c.l.b16 %v1141
          %v1661 = vunpack.c.l.b16 %v1142
          %v1662 = vunpack.c.l.b16 %v1143
          %v1663 = vunpack.c.l.b16 %v1144
          %v1664 = vunpack.c.l.b16 %v1145
          %v1665 = vunpack.c.l.b16 %v1146
          %v1666 = vunpack.c.l.b16 %v1147
          %v1667 = vunpack.c.l.b16 %v1148
          %v1668 = vunpack.c.l.b16 %v1149
          %v1669 = vpack.c.b16 %v1414, %v1413
          %v1670 = vpack.c.b16 %v1416, %v1415
          %v1671 = vpack.c.b16 %v1418, %v1417
          %v1672 = vpack.c.b16 %v1420, %v1419
          %v1673 = vpack.c.b16 %v1422, %v1421
          %v1674 = vpack.c.b16 %v1424, %v1423
          %v1675 = vpack.c.b16 %v1426, %v1425
          %v1676 = vpack.c.b16 %v1428, %v1427
          %v1677 = vpack.c.b16 %v1430, %v1429
          %v1678 = vpack.c.b16 %v1432, %v1431
          %v1679 = vpack.c.b16 %v1434, %v1433
          %v1680 = vpack.c.b16 %v1436, %v1435
          %v1681 = vpack.c.b16 %v1438, %v1437
          %v1682 = vpack.c.b16 %v1440, %v1439
          %v1683 = vpack.c.b16 %v1442, %v1441
          %v1684 = vpack.c.b16 %v1444, %v1443
          %v1685 = vpack.c.b16 %v1446, %v1445
          %v1686 = vpack.c.b16 %v1448, %v1447
          %v1687 = vpack.c.b16 %v1450, %v1449
          %v1688 = vpack.c.b16 %v1452, %v1451
          %v1689 = vpack.c.b16 %v1454, %v1453
          %v1690 = vpack.c.b16 %v1456, %v1455
          %v1691 = vpack.c.b16 %v1458, %v1457
          %v1692 = vpack.c.b16 %v1460, %v1459
          %v1693 = vpack.c.b16 %v1462, %v1461
          %v1694 = vpack.c.b16 %v1464, %v1463
          %v1695 = vpack.c.b16 %v1466, %v1465
          %v1696 = vpack.c.b16 %v1468, %v1467
          %v1697 = vpack.c.b16 %v1470, %v1469
          %v1698 = vpack.c.b16 %v1472, %v1471
          %v1699 = vpack.c.b16 %v1474, %v1473
          %v1700 = vpack.c.b16 %v1476, %v1475
          %v1701 = vpack.c.b16 %v1478, %v1477
          %v1702 = vpack.c.b16 %v1480, %v1479
          %v1703 = vpack.c.b16 %v1482, %v1481
          %v1704 = vpack.c.b16 %v1484, %v1483
          %v1705 = vpack.c.b16 %v1486, %v1485
          %v1706 = vpack.c.b16 %v1488, %v1487
          %v1707 = vpack.c.b16 %v1490, %v1489
          %v1708 = vpack.c.b16 %v1492, %v1491
          %v1709 = vpack.c.b16 %v1494, %v1493
          %v1710 = vpack.c.b16 %v1496, %v1495
          %v1711 = vpack.c.b16 %v1498, %v1497
          %v1712 = vpack.c.b16 %v1500, %v1499
          %v1713 = vpack.c.b16 %v1502, %v1501
          %v1714 = vpack.c.b16 %v1504, %v1503
          %v1715 = vpack.c.b16 %v1506, %v1505
          %v1716 = vpack.c.b16 %v1508, %v1507
          %v1717 = vpack.c.b16 %v1510, %v1509
          %v1718 = vpack.c.b16 %v1512, %v1511
          %v1719 = vpack.c.b16 %v1514, %v1513
          %v1720 = vpack.c.b16 %v1516, %v1515
          %v1721 = vpack.c.b16 %v1518, %v1517
          %v1722 = vpack.c.b16 %v1520, %v1519
          %v1723 = vpack.c.b16 %v1522, %v1521
          %v1724 = vpack.c.b16 %v1524, %v1523
          %v1725 = vpack.c.b16 %v1526, %v1525
          %v1726 = vpack.c.b16 %v1528, %v1527
          %v1727 = vpack.c.b16 %v1530, %v1529
          %v1728 = vpack.c.b16 %v1532, %v1531
          %v1729 = vpack.c.b16 %v1534, %v1533
          %v1730 = vpack.c.b16 %v1536, %v1535
          %v1731 = vpack.c.b16 %v1538, %v1537
          %v1732 = vpack.c.b16 %v1540, %v1539
          %v1733 = vpack.c.b16 %v1542, %v1541
          %v1734 = vpack.c.b16 %v1544, %v1543
          %v1735 = vpack.c.b16 %v1546, %v1545
          %v1736 = vpack.c.b16 %v1548, %v1547
          %v1737 = vpack.c.b16 %v1550, %v1549
          %v1738 = vpack.c.b16 %v1552, %v1551
          %v1739 = vpack.c.b16 %v1554, %v1553
          %v1740 = vpack.c.b16 %v1556, %v1555
          %v1741 = vpack.c.b16 %v1558, %v1557
          %v1742 = vpack.c.b16 %v1560, %v1559
          %v1743 = vpack.c.b16 %v1562, %v1561
          %v1744 = vpack.c.b16 %v1564, %v1563
          %v1745 = vpack.c.b16 %v1566, %v1565
          %v1746 = vpack.c.b16 %v1568, %v1567
          %v1747 = vpack.c.b16 %v1570, %v1569
          %v1748 = vpack.c.b16 %v1572, %v1571
          %v1749 = vpack.c.b16 %v1574, %v1573
          %v1750 = vpack.c.b16 %v1576, %v1575
          %v1751 = vpack.c.b16 %v1578, %v1577
          %v1752 = vpack.c.b16 %v1580, %v1579
          %v1753 = vpack.c.b16 %v1582, %v1581
          %v1754 = vpack.c.b16 %v1584, %v1583
          %v1755 = vpack.c.b16 %v1586, %v1585
          %v1756 = vpack.c.b16 %v1588, %v1587
          %v1757 = vpack.c.b16 %v1590, %v1589
          %v1758 = vpack.c.b16 %v1592, %v1591
          %v1759 = vpack.c.b16 %v1594, %v1593
          %v1760 = vpack.c.b16 %v1596, %v1595
          %v1761 = vpack.c.b16 %v1598, %v1597
          %v1762 = vpack.c.b16 %v1600, %v1599
          %v1763 = vpack.c.b16 %v1602, %v1601
          %v1764 = vpack.c.b16 %v1604, %v1603
          %v1765 = vpack.c.b16 %v1606, %v1605
          %v1766 = vpack.c.b16 %v1608, %v1607
          %v1767 = vpack.c.b16 %v1610, %v1609
          %v1768 = vpack.c.b16 %v1612, %v1611
          %v1769 = vpack.c.b16 %v1614, %v1613
          %v1770 = vpack.c.b16 %v1616, %v1615
          %v1771 = vpack.c.b16 %v1618, %v1617
          %v1772 = vpack.c.b16 %v1620, %v1619
          %v1773 = vpack.c.b16 %v1622, %v1621
          %v1774 = vpack.c.b16 %v1624, %v1623
          %v1775 = vpack.c.b16 %v1626, %v1625
          %v1776 = vpack.c.b16 %v1628, %v1627
          %v1777 = vpack.c.b16 %v1630, %v1629
          %v1778 = vpack.c.b16 %v1632, %v1631
          %v1779 = vpack.c.b16 %v1634, %v1633
          %v1780 = vpack.c.b16 %v1636, %v1635
          %v1781 = vpack.c.b16 %v1638, %v1637
          %v1782 = vpack.c.b16 %v1640, %v1639
          %v1783 = vpack.c.b16 %v1642, %v1641
          %v1784 = vpack.c.b16 %v1644, %v1643
          %v1785 = vpack.c.b16 %v1646, %v1645
          %v1786 = vpack.c.b16 %v1648, %v1647
          %v1787 = vpack.c.b16 %v1650, %v1649
          %v1788 = vpack.c.b16 %v1652, %v1651
          %v1789 = vpack.c.b16 %v1654, %v1653
          %v1790 = vpack.c.b16 %v1656, %v1655
          %v1791 = vpack.c.b16 %v1658, %v1657
          %v1792 = vpack.c.b16 %v1660, %v1659
          %v1793 = vpack.c.b16 %v1662, %v1661
          %v1794 = vpack.c.b16 %v1664, %v1663
          %v1795 = vpack.c.b16 %v1666, %v1665
          %v1796 = vpack.c.b16 %v1668, %v1667
          %1925 = vmatprep.subr.bf16.mxu0 0
          %1926 = vmatpush1.bf16.msra.mxu0 %v1676
          %1927 = vmatprep.subr.bf16.mxu0 0
          %1928 = vmatpush1.bf16.msra.mxu0 %v1675
          %1929 = vmatprep.subr.bf16.mxu0 0
          %1930 = vmatpush1.bf16.msra.mxu0 %v1674
          %1931 = vmatprep.subr.bf16.mxu0 0
          %1932 = vmatpush1.bf16.msra.mxu0 %v1673
          %1933 = vmatprep.subr.bf16.mxu0 0
          %1934 = vmatpush1.bf16.msra.mxu0 %v1672
          %1935 = vmatprep.subr.bf16.mxu0 0
          %1936 = vmatpush1.bf16.msra.mxu0 %v1671
          %1937 = vmatprep.subr.bf16.mxu0 0
          %1938 = vmatpush1.bf16.msra.mxu0 %v1670
          %1939 = vmatprep.subr.bf16.mxu0 0
          %1940 = vmatpush1.bf16.msra.mxu0 %v1669
          %1941 = vmatprep.subr.bf16.mxu0 0
          %1942 = vmatpush2.bf16.msra.mxu0 %v1684
          %1943 = vmatprep.subr.bf16.mxu0 0
          %1944 = vmatpush2.bf16.msra.mxu0 %v1683
          %1945 = vmatprep.subr.bf16.mxu0 0
          %1946 = vmatpush2.bf16.msra.mxu0 %v1682
          %1947 = vmatprep.subr.bf16.mxu0 0
          %1948 = vmatpush2.bf16.msra.mxu0 %v1681
          %1949 = vmatprep.subr.bf16.mxu0 0
          %1950 = vmatpush2.bf16.msra.mxu0 %v1680
          %1951 = vmatprep.subr.bf16.mxu0 0
          %1952 = vmatpush2.bf16.msra.mxu0 %v1679
          %1953 = vmatprep.subr.bf16.mxu0 0
          %1954 = vmatpush2.bf16.msra.mxu0 %v1678
          %1955 = vmatprep.subr.bf16.mxu0 0
          %1956 = vmatpush2.bf16.msra.mxu0 %v1677
          %1957 = vmatprep.mubr.bf16.mxu0 %v879
          %1958 = vmatmul.mubr.bf16.gmra.mxu0 %v878
          %v1959 = vpop.f32.mrf.mxu0
          %v1960 = vadd.f32 %v1155, %v1959
          %v1961 = vpop.f32.mrf.mxu0
          %v1962 = vpop.f32.mrf.mxu0
          %v1963 = vpop.f32.mrf.mxu0
          %1964 = vdwg.mxu0
          %1965 = vmatprep.subr.bf16.mxu0 0
          %1966 = vmatpush1.bf16.msra.mxu0 %v1692
          %1967 = vmatprep.subr.bf16.mxu0 0
          %1968 = vmatpush1.bf16.msra.mxu0 %v1691
          %1969 = vmatprep.subr.bf16.mxu0 0
          %1970 = vmatpush1.bf16.msra.mxu0 %v1690
          %1971 = vmatprep.subr.bf16.mxu0 0
          %1972 = vmatpush1.bf16.msra.mxu0 %v1689
          %1973 = vmatprep.subr.bf16.mxu0 0
          %1974 = vmatpush1.bf16.msra.mxu0 %v1688
          %1975 = vmatprep.subr.bf16.mxu0 0
          %1976 = vmatpush1.bf16.msra.mxu0 %v1687
          %1977 = vmatprep.subr.bf16.mxu0 0
          %1978 = vmatpush1.bf16.msra.mxu0 %v1686
          %1979 = vmatprep.subr.bf16.mxu0 0
          %1980 = vmatpush1.bf16.msra.mxu0 %v1685
          %1981 = vmatprep.subr.bf16.mxu0 0
          %1982 = vmatpush2.bf16.msra.mxu0 %v1700
          %1983 = vmatprep.subr.bf16.mxu0 0
          %1984 = vmatpush2.bf16.msra.mxu0 %v1699
          %1985 = vmatprep.subr.bf16.mxu0 0
          %1986 = vmatpush2.bf16.msra.mxu0 %v1698
          %1987 = vmatprep.subr.bf16.mxu0 0
          %1988 = vmatpush2.bf16.msra.mxu0 %v1697
          %1989 = vmatprep.subr.bf16.mxu0 0
          %1990 = vmatpush2.bf16.msra.mxu0 %v1696
          %1991 = vmatprep.subr.bf16.mxu0 0
          %1992 = vmatpush2.bf16.msra.mxu0 %v1695
          %1993 = vmatprep.subr.bf16.mxu0 0
          %1994 = vmatpush2.bf16.msra.mxu0 %v1694
          %1995 = vmatprep.subr.bf16.mxu0 0
          %1996 = vmatpush2.bf16.msra.mxu0 %v1693
          %1997 = vmatprep.mubr.bf16.mxu0 %v881
          %1998 = vmatmul.mubr.bf16.gmra.mxu0 %v880
          %v1999 = vpop.f32.mrf.mxu0
          %v2000 = vadd.f32 %v1960, %v1999
          %v2001 = vpop.f32.mrf.mxu0
          %v2002 = vpop.f32.mrf.mxu0
          %v2003 = vpop.f32.mrf.mxu0
          %2004 = vdwg.mxu0
          %2005 = vmatprep.subr.bf16.mxu0 0
          %2006 = vmatpush1.bf16.msra.mxu0 %v1708
          %2007 = vmatprep.subr.bf16.mxu0 0
          %2008 = vmatpush1.bf16.msra.mxu0 %v1707
          %2009 = vmatprep.subr.bf16.mxu0 0
          %2010 = vmatpush1.bf16.msra.mxu0 %v1706
          %2011 = vmatprep.subr.bf16.mxu0 0
          %2012 = vmatpush1.bf16.msra.mxu0 %v1705
          %2013 = vmatprep.subr.bf16.mxu0 0
          %2014 = vmatpush1.bf16.msra.mxu0 %v1704
          %2015 = vmatprep.subr.bf16.mxu0 0
          %2016 = vmatpush1.bf16.msra.mxu0 %v1703
          %2017 = vmatprep.subr.bf16.mxu0 0
          %2018 = vmatpush1.bf16.msra.mxu0 %v1702
          %2019 = vmatprep.subr.bf16.mxu0 0
          %2020 = vmatpush1.bf16.msra.mxu0 %v1701
          %2021 = vmatprep.subr.bf16.mxu0 0
          %2022 = vmatpush2.bf16.msra.mxu0 %v1716
          %2023 = vmatprep.subr.bf16.mxu0 0
          %2024 = vmatpush2.bf16.msra.mxu0 %v1715
          %2025 = vmatprep.subr.bf16.mxu0 0
          %2026 = vmatpush2.bf16.msra.mxu0 %v1714
          %2027 = vmatprep.subr.bf16.mxu0 0
          %2028 = vmatpush2.bf16.msra.mxu0 %v1713
          %2029 = vmatprep.subr.bf16.mxu0 0
          %2030 = vmatpush2.bf16.msra.mxu0 %v1712
          %2031 = vmatprep.subr.bf16.mxu0 0
          %2032 = vmatpush2.bf16.msra.mxu0 %v1711
          %2033 = vmatprep.subr.bf16.mxu0 0
          %2034 = vmatpush2.bf16.msra.mxu0 %v1710
          %2035 = vmatprep.subr.bf16.mxu0 0
          %2036 = vmatpush2.bf16.msra.mxu0 %v1709
          %2037 = vmatprep.mubr.bf16.mxu0 %v883
          %2038 = vmatmul.mubr.bf16.gmra.mxu0 %v882
          %v2039 = vpop.f32.mrf.mxu0
          %v2040 = vadd.f32 %v2000, %v2039
          %v2041 = vpop.f32.mrf.mxu0
          %v2042 = vpop.f32.mrf.mxu0
          %v2043 = vpop.f32.mrf.mxu0
          %2044 = vdwg.mxu0
          %2045 = vmatprep.subr.bf16.mxu0 0
          %2046 = vmatpush1.bf16.msra.mxu0 %v1724
          %2047 = vmatprep.subr.bf16.mxu0 0
          %2048 = vmatpush1.bf16.msra.mxu0 %v1723
          %2049 = vmatprep.subr.bf16.mxu0 0
          %2050 = vmatpush1.bf16.msra.mxu0 %v1722
          %2051 = vmatprep.subr.bf16.mxu0 0
          %2052 = vmatpush1.bf16.msra.mxu0 %v1721
          %2053 = vmatprep.subr.bf16.mxu0 0
          %2054 = vmatpush1.bf16.msra.mxu0 %v1720
          %2055 = vmatprep.subr.bf16.mxu0 0
          %2056 = vmatpush1.bf16.msra.mxu0 %v1719
          %2057 = vmatprep.subr.bf16.mxu0 0
          %2058 = vmatpush1.bf16.msra.mxu0 %v1718
          %2059 = vmatprep.subr.bf16.mxu0 0
          %2060 = vmatpush1.bf16.msra.mxu0 %v1717
          %2061 = vmatprep.subr.bf16.mxu0 0
          %2062 = vmatpush2.bf16.msra.mxu0 %v1732
          %2063 = vmatprep.subr.bf16.mxu0 0
          %2064 = vmatpush2.bf16.msra.mxu0 %v1731
          %2065 = vmatprep.subr.bf16.mxu0 0
          %2066 = vmatpush2.bf16.msra.mxu0 %v1730
          %2067 = vmatprep.subr.bf16.mxu0 0
          %2068 = vmatpush2.bf16.msra.mxu0 %v1729
          %2069 = vmatprep.subr.bf16.mxu0 0
          %2070 = vmatpush2.bf16.msra.mxu0 %v1728
          %2071 = vmatprep.subr.bf16.mxu0 0
          %2072 = vmatpush2.bf16.msra.mxu0 %v1727
          %2073 = vmatprep.subr.bf16.mxu0 0
          %2074 = vmatpush2.bf16.msra.mxu0 %v1726
          %2075 = vmatprep.subr.bf16.mxu0 0
          %2076 = vmatpush2.bf16.msra.mxu0 %v1725
          %2077 = vmatprep.mubr.bf16.mxu0 %v885
          %2078 = vmatmul.mubr.bf16.gmra.mxu0 %v884
          %v2079 = vpop.f32.mrf.mxu0
          %v2080 = vadd.f32 %v2040, %v2079
          %v2081 = vpop.f32.mrf.mxu0
          %v2082 = vpop.f32.mrf.mxu0
          %v2083 = vpop.f32.mrf.mxu0
          %2084 = vdwg.mxu0
          %2085 = vmatprep.subr.bf16.mxu0 0
          %2086 = vmatpush1.bf16.msra.mxu0 %v1740
          %2087 = vmatprep.subr.bf16.mxu0 0
          %2088 = vmatpush1.bf16.msra.mxu0 %v1739
          %2089 = vmatprep.subr.bf16.mxu0 0
          %2090 = vmatpush1.bf16.msra.mxu0 %v1738
          %2091 = vmatprep.subr.bf16.mxu0 0
          %2092 = vmatpush1.bf16.msra.mxu0 %v1737
          %2093 = vmatprep.subr.bf16.mxu0 0
          %2094 = vmatpush1.bf16.msra.mxu0 %v1736
          %2095 = vmatprep.subr.bf16.mxu0 0
          %2096 = vmatpush1.bf16.msra.mxu0 %v1735
          %2097 = vmatprep.subr.bf16.mxu0 0
          %2098 = vmatpush1.bf16.msra.mxu0 %v1734
          %2099 = vmatprep.subr.bf16.mxu0 0
          %2100 = vmatpush1.bf16.msra.mxu0 %v1733
          %2101 = vmatprep.subr.bf16.mxu0 0
          %2102 = vmatpush2.bf16.msra.mxu0 %v1748
          %2103 = vmatprep.subr.bf16.mxu0 0
          %2104 = vmatpush2.bf16.msra.mxu0 %v1747
          %2105 = vmatprep.subr.bf16.mxu0 0
          %2106 = vmatpush2.bf16.msra.mxu0 %v1746
          %2107 = vmatprep.subr.bf16.mxu0 0
          %2108 = vmatpush2.bf16.msra.mxu0 %v1745
          %2109 = vmatprep.subr.bf16.mxu0 0
          %2110 = vmatpush2.bf16.msra.mxu0 %v1744
          %2111 = vmatprep.subr.bf16.mxu0 0
          %2112 = vmatpush2.bf16.msra.mxu0 %v1743
          %2113 = vmatprep.subr.bf16.mxu0 0
          %2114 = vmatpush2.bf16.msra.mxu0 %v1742
          %2115 = vmatprep.subr.bf16.mxu0 0
          %2116 = vmatpush2.bf16.msra.mxu0 %v1741
          %2117 = vmatprep.mubr.bf16.mxu0 %v887
          %2118 = vmatmul.mubr.bf16.gmra.mxu0 %v886
          %v2119 = vpop.f32.mrf.mxu0
          %v2120 = vadd.f32 %v2080, %v2119
          %v2121 = vpop.f32.mrf.mxu0
          %v2122 = vpop.f32.mrf.mxu0
          %v2123 = vpop.f32.mrf.mxu0
          %2124 = vdwg.mxu0
          %2125 = vmatprep.subr.bf16.mxu0 0
          %2126 = vmatpush1.bf16.msra.mxu0 %v1756
          %2127 = vmatprep.subr.bf16.mxu0 0
          %2128 = vmatpush1.bf16.msra.mxu0 %v1755
          %2129 = vmatprep.subr.bf16.mxu0 0
          %2130 = vmatpush1.bf16.msra.mxu0 %v1754
          %2131 = vmatprep.subr.bf16.mxu0 0
          %2132 = vmatpush1.bf16.msra.mxu0 %v1753
          %2133 = vmatprep.subr.bf16.mxu0 0
          %2134 = vmatpush1.bf16.msra.mxu0 %v1752
          %2135 = vmatprep.subr.bf16.mxu0 0
          %2136 = vmatpush1.bf16.msra.mxu0 %v1751
          %2137 = vmatprep.subr.bf16.mxu0 0
          %2138 = vmatpush1.bf16.msra.mxu0 %v1750
          %2139 = vmatprep.subr.bf16.mxu0 0
          %2140 = vmatpush1.bf16.msra.mxu0 %v1749
          %2141 = vmatprep.subr.bf16.mxu0 0
          %2142 = vmatpush2.bf16.msra.mxu0 %v1764
          %2143 = vmatprep.subr.bf16.mxu0 0
          %2144 = vmatpush2.bf16.msra.mxu0 %v1763
          %2145 = vmatprep.subr.bf16.mxu0 0
          %2146 = vmatpush2.bf16.msra.mxu0 %v1762
          %2147 = vmatprep.subr.bf16.mxu0 0
          %2148 = vmatpush2.bf16.msra.mxu0 %v1761
          %2149 = vmatprep.subr.bf16.mxu0 0
          %2150 = vmatpush2.bf16.msra.mxu0 %v1760
          %2151 = vmatprep.subr.bf16.mxu0 0
          %2152 = vmatpush2.bf16.msra.mxu0 %v1759
          %2153 = vmatprep.subr.bf16.mxu0 0
          %2154 = vmatpush2.bf16.msra.mxu0 %v1758
          %2155 = vmatprep.subr.bf16.mxu0 0
          %2156 = vmatpush2.bf16.msra.mxu0 %v1757
          %2157 = vmatprep.mubr.bf16.mxu0 %v889
          %2158 = vmatmul.mubr.bf16.gmra.mxu0 %v888
          %v2159 = vpop.f32.mrf.mxu0
          %v2160 = vadd.f32 %v2120, %v2159
          %v2161 = vpop.f32.mrf.mxu0
          %v2162 = vpop.f32.mrf.mxu0
          %v2163 = vpop.f32.mrf.mxu0
          %2164 = vdwg.mxu0
          %2165 = vmatprep.subr.bf16.mxu0 0
          %2166 = vmatpush1.bf16.msra.mxu0 %v1772
          %2167 = vmatprep.subr.bf16.mxu0 0
          %2168 = vmatpush1.bf16.msra.mxu0 %v1771
          %2169 = vmatprep.subr.bf16.mxu0 0
          %2170 = vmatpush1.bf16.msra.mxu0 %v1770
          %2171 = vmatprep.subr.bf16.mxu0 0
          %2172 = vmatpush1.bf16.msra.mxu0 %v1769
          %2173 = vmatprep.subr.bf16.mxu0 0
          %2174 = vmatpush1.bf16.msra.mxu0 %v1768
          %2175 = vmatprep.subr.bf16.mxu0 0
          %2176 = vmatpush1.bf16.msra.mxu0 %v1767
          %2177 = vmatprep.subr.bf16.mxu0 0
          %2178 = vmatpush1.bf16.msra.mxu0 %v1766
          %2179 = vmatprep.subr.bf16.mxu0 0
          %2180 = vmatpush1.bf16.msra.mxu0 %v1765
          %2181 = vmatprep.subr.bf16.mxu0 0
          %2182 = vmatpush2.bf16.msra.mxu0 %v1780
          %2183 = vmatprep.subr.bf16.mxu0 0
          %2184 = vmatpush2.bf16.msra.mxu0 %v1779
          %2185 = vmatprep.subr.bf16.mxu0 0
          %2186 = vmatpush2.bf16.msra.mxu0 %v1778
          %2187 = vmatprep.subr.bf16.mxu0 0
          %2188 = vmatpush2.bf16.msra.mxu0 %v1777
          %2189 = vmatprep.subr.bf16.mxu0 0
          %2190 = vmatpush2.bf16.msra.mxu0 %v1776
          %2191 = vmatprep.subr.bf16.mxu0 0
          %2192 = vmatpush2.bf16.msra.mxu0 %v1775
          %2193 = vmatprep.subr.bf16.mxu0 0
          %2194 = vmatpush2.bf16.msra.mxu0 %v1774
          %2195 = vmatprep.subr.bf16.mxu0 0
          %2196 = vmatpush2.bf16.msra.mxu0 %v1773
          %2197 = vmatprep.mubr.bf16.mxu0 %v891
          %2198 = vmatmul.mubr.bf16.gmra.mxu0 %v890
          %v2199 = vpop.f32.mrf.mxu0
          %v2200 = vadd.f32 %v2160, %v2199
          %v2201 = vpop.f32.mrf.mxu0
          %v2202 = vpop.f32.mrf.mxu0
          %v2203 = vpop.f32.mrf.mxu0
          %2204 = vdwg.mxu0
          %2205 = vmatprep.subr.bf16.mxu0 0
          %2206 = vmatpush1.bf16.msra.mxu0 %v1788
          %2207 = vmatprep.subr.bf16.mxu0 0
          %2208 = vmatpush1.bf16.msra.mxu0 %v1787
          %2209 = vmatprep.subr.bf16.mxu0 0
          %2210 = vmatpush1.bf16.msra.mxu0 %v1786
          %2211 = vmatprep.subr.bf16.mxu0 0
          %2212 = vmatpush1.bf16.msra.mxu0 %v1785
          %2213 = vmatprep.subr.bf16.mxu0 0
          %2214 = vmatpush1.bf16.msra.mxu0 %v1784
          %2215 = vmatprep.subr.bf16.mxu0 0
          %2216 = vmatpush1.bf16.msra.mxu0 %v1783
          %2217 = vmatprep.subr.bf16.mxu0 0
          %2218 = vmatpush1.bf16.msra.mxu0 %v1782
          %2219 = vmatprep.subr.bf16.mxu0 0
          %2220 = vmatpush1.bf16.msra.mxu0 %v1781
          %2221 = vmatprep.subr.bf16.mxu0 0
          %2222 = vmatpush2.bf16.msra.mxu0 %v1796
          %2223 = vmatprep.subr.bf16.mxu0 0
          %2224 = vmatpush2.bf16.msra.mxu0 %v1795
          %2225 = vmatprep.subr.bf16.mxu0 0
          %2226 = vmatpush2.bf16.msra.mxu0 %v1794
          %2227 = vmatprep.subr.bf16.mxu0 0
          %2228 = vmatpush2.bf16.msra.mxu0 %v1793
          %2229 = vmatprep.subr.bf16.mxu0 0
          %2230 = vmatpush2.bf16.msra.mxu0 %v1792
          %2231 = vmatprep.subr.bf16.mxu0 0
          %2232 = vmatpush2.bf16.msra.mxu0 %v1791
          %2233 = vmatprep.subr.bf16.mxu0 0
          %2234 = vmatpush2.bf16.msra.mxu0 %v1790
          %2235 = vmatprep.subr.bf16.mxu0 0
          %2236 = vmatpush2.bf16.msra.mxu0 %v1789
          %2237 = vmatprep.mubr.bf16.mxu0 %v893
          %2238 = vmatmul.mubr.bf16.gmra.mxu0 %v892
          %v2239 = vpop.f32.mrf.mxu0
          %v2240 = vadd.f32 %v2200, %v2239
          %v2241 = vpop.f32.mrf.mxu0
          %v2242 = vpop.f32.mrf.mxu0
          %v2243 = vpop.f32.mrf.mxu0
          %2244 = vdwg.mxu0
          %vm2245 = vcmask 1041408
          %v2246 = vsel %vm2245, %v2240, 0.0
          %v2247 = vrot.slane %v2246, 4
          %v2248 = vadd.f32 %v2246, %v2247
          %v2249 = vrot.slane %v2248, 2
          %v2250 = vadd.f32 %v2248, %v2249
          %v2251 = vrot.slane %v2250, 1
          %v2252 = vadd.f32 %v2250, %v2251
          %v2253 = vrcp.pop 2.0
          %v2254 = vmul.f32 %v2252, %v2253
          %v2255 = vmul.f32 %v2240, %v2240
          %v2256 = vsel %vm2245, %v2255, 0.0
          %v2257 = vrot.slane %v2256, 4
          %v2258 = vadd.f32 %v2256, %v2257
          %v2259 = vrot.slane %v2258, 2
          %v2260 = vadd.f32 %v2258, %v2259
          %v2261 = vrot.slane %v2260, 1
          %v2262 = vadd.f32 %v2260, %v2261
          %v2263 = vmul.f32 %v2262, %v2253
          %v2264 = vmul.f32 %v2254, %v2254
          %v2265 = vsub.f32 %v2263, %v2264
          %v2266 = vsub.f32 %v2240, %v2254
          %v2267 = vadd.f32 %v2265, 1e-05
          %v2268 = vrsqrt.pop %v2267
          %v2269 = vmul.f32 %v2266, %v2268
          %v2270 = vld [vmem:[%s5] sm:$0x1]
          %v2272 = vlaneseq
          %v2273 = vshrl.u32 %v2272, 7
          %v2274 = vsub.s32 0, %v2273
          %v2275 = vrot.slane %v2270, %v2274
          %v2277 = vmul.f32 %v2269, %v2275
          %v2278 = vld [vmem:[%s6] sm:$0x1]
          %v2280 = vlaneseq
          %v2281 = vshrl.u32 %v2280, 7
          %v2282 = vsub.s32 0, %v2281
          %v2283 = vrot.slane %v2278, %v2282
          %v2285 = vadd.f32 %v2277, %v2283
          %2286 = vst [vmem:[#allocation11] sm:$0x3] %v2285
        $region72: #{tpu_custom_call.1} parent=47 // pred_fallthru
          _
        // Predicated region
        $region73: #{tpu_custom_call.1} parent=47 // pred_check
          %p2287 = pneg %p189
        $region74: #{tpu_custom_call.1} parent=47 // pred_check_branch
          %2289 = sbr.rel (%p2287) target = $region76
        $region75: #{tpu_custom_call.1} parent=47 // pred_region
          %s2291 = ssub.s32 32, 32
          %2292 = vsyncadd [#allocation5], %s2291
          %s2294 = sshll.u32 [#allocation11], 4
          %s2295 = int_to_ptr.vmem [resolvable:$true] %s2294
          %2297 = dma.vmem_to_hbm [thread:$0]  %s2295, 32, %s7, [#allocation5]
        $region76: #{tpu_custom_call.1} parent=47 // pred_fallthru
          _
        // Predicated region
        $region77: #{tpu_custom_call.1} parent=47 // pred_check
          %p2298 = pneg %p189
        $region78: #{tpu_custom_call.1} parent=47 // pred_check_branch
          %2300 = sbr.rel (%p2298) target = $region80
        $region79: #{tpu_custom_call.1} parent=47 // pred_region
          %2301 = dma.done [#allocation5], 32
        $region80: #{tpu_custom_call.1} parent=47 // pred_fallthru
          _
      $region48: #{tpu_custom_call.1} parent=5 // pred_fallthru
        _
      %p2302 = scmp.le.s32.totalorder 2, %s19
      // Predicated region
      $region81: #{tpu_custom_call.1} parent=5 // pred_check
        %p2303 = pneg %p2302
      $region82: #{tpu_custom_call.1} parent=5 // pred_check_branch
        %2305 = sbr.rel (%p2303) target = $region84
      $region83: #{tpu_custom_call.1} parent=5 // pred_region
        %s2306 = ssub.s32 %s19, 2
      $region84: #{tpu_custom_call.1} parent=5 // pred_fallthru
        _
    $region6: #{tpu_custom_call.1} parent=1 // loop_footer
      %s23 = sadd.s32 1, %s19
    $region7: #{tpu_custom_call.1} parent=1 // loop_footer_branch
      %18 = sbr.rel target = $region3
    $region8: #{tpu_custom_call.1} parent=1 // loop_exit
      _
    %2307 = vsyncpa [#allocation4], 1
    %s2308 = scalar_lea.sflag [#allocation4], 1
    %2309 = vsyncpa %s2308, 1
    %2310 = vsyncpa [#allocation7], 1
    %2311 = vsyncpa [#allocation10], 1
    %2312 = vsyncpa [#allocation5], 1
    %s2313 = scalar_lea.sflag [#allocation5], 1
    %2314 = vsyncpa %s2313, 1

</llo_original>
